<compile_context>
chip_gen: v6e
topology: v6e:2x2x1
jax: 0.10.0
libtpu: 0.0.40
codegen_flags: <defaults>
</compile_context>

<pallas_src>
import functools

import jax
import jax.numpy as jnp
from jax import lax
from jax.experimental import pallas as pl
from jax.experimental.pallas import tpu as pltpu


# ---------------------------------------------------------------------------
# Tiled linear (matmul / matmul + bias) kernels
# ---------------------------------------------------------------------------

def _linear_kernel(x_ref, w_ref, o_ref, acc_ref):
    @pl.when(pl.program_id(2) == 0)
    def _():
        acc_ref[...] = jnp.zeros_like(acc_ref)

    acc_ref[...] += jnp.dot(
        x_ref[...], w_ref[...], preferred_element_type=jnp.float32
    )

    @pl.when(pl.program_id(2) == pl.num_programs(2) - 1)
    def _():
        o_ref[...] = acc_ref[...].astype(o_ref.dtype)


def _linear_bias_kernel(x_ref, w_ref, b_ref, o_ref, acc_ref):
    @pl.when(pl.program_id(2) == 0)
    def _():
        acc_ref[...] = jnp.zeros_like(acc_ref)

    acc_ref[...] += jnp.dot(
        x_ref[...], w_ref[...], preferred_element_type=jnp.float32
    )

    @pl.when(pl.program_id(2) == pl.num_programs(2) - 1)
    def _():
        o_ref[...] = (acc_ref[...] + b_ref[...].astype(jnp.float32)).astype(o_ref.dtype)


def _pick_tile(dim, target):
    """Largest clean tile: the target if it divides dim, else the full dim."""
    if dim <= target:
        return dim
    if dim % target == 0:
        return target
    # TODO(synk): ragged dims would need masked edge tiles; fall back to full dim.
    return dim


def pallas_linear(x2d, w, b=None, *, tm=256, tn=256, tk=512):
    """x2d: (M, K), w: (K, N), b: (1, N) or None -> (M, N). Tiled + pipelined."""
    M, K = x2d.shape
    Kw, Nout = w.shape
    assert K == Kw
    tm = _pick_tile(M, tm)
    tn = _pick_tile(Nout, tn)
    tk = _pick_tile(K, tk)
    grid = (M // tm, Nout // tn, K // tk)

    in_specs = [
        pl.BlockSpec((tm, tk), lambda i, j, k: (i, k)),
        pl.BlockSpec((tk, tn), lambda i, j, k: (k, j)),
    ]
    args = (x2d, w)
    kernel = _linear_kernel
    if b is not None:
        in_specs.append(pl.BlockSpec((1, tn), lambda i, j, k: (0, j)))
        args = (x2d, w, b)
        kernel = _linear_bias_kernel

    itemsize = jnp.dtype(x2d.dtype).itemsize
    cost = pl.CostEstimate(
        flops=2 * M * Nout * K,
        transcendentals=0,
        bytes_accessed=itemsize * (M * K + K * Nout + M * Nout),
    )

    return pl.pallas_call(
        kernel,
        out_shape=jax.ShapeDtypeStruct((M, Nout), x2d.dtype),
        grid=grid,
        in_specs=in_specs,
        out_specs=pl.BlockSpec((tm, tn), lambda i, j, k: (i, j)),
        scratch_shapes=[pltpu.VMEM((tm, tn), jnp.float32)],
        compiler_params=pltpu.CompilerParams(
            dimension_semantics=("parallel", "parallel", "arbitrary")
        ),
        cost_estimate=cost,
    )(*args)


# ---------------------------------------------------------------------------
# Flash-style attention kernel (online softmax over a KV grid axis)
# ---------------------------------------------------------------------------

def _flash_attn_kernel(q_ref, k_ref, v_ref, o_ref, m_ref, l_ref, acc_ref, *, scale):
    kv_idx = pl.program_id(3)

    @pl.when(kv_idx == 0)
    def _():
        m_ref[...] = jnp.full(m_ref.shape, -jnp.inf, dtype=m_ref.dtype)
        l_ref[...] = jnp.zeros(l_ref.shape, dtype=l_ref.dtype)
        acc_ref[...] = jnp.zeros(acc_ref.shape, dtype=acc_ref.dtype)

    # Pre-scale q on the (tq, Dh) tile (cheaper than scaling the (tq, tkv) scores).
    q = q_ref[...] * scale
    # s = q @ k^T via dot_general (contract over Dh) -- no materialized k.T.
    s = lax.dot_general(
        q, k_ref[...],
        dimension_numbers=(((1,), (1,)), ((), ())),
        preferred_element_type=jnp.float32,
    )  # (tq, tkv), f32

    m_prev = m_ref[...]
    m_new = jnp.maximum(m_prev, jnp.max(s, axis=-1, keepdims=True))
    alpha = jnp.exp(m_prev - m_new)
    p = jnp.exp(s - m_new)
    l_ref[...] = alpha * l_ref[...] + jnp.sum(p, axis=-1, keepdims=True)
    acc_ref[...] = alpha * acc_ref[...] + jnp.dot(
        p.astype(v_ref.dtype), v_ref[...], preferred_element_type=jnp.float32
    )
    m_ref[...] = m_new

    @pl.when(kv_idx == pl.num_programs(3) - 1)
    def _():
        inv_l = pl.reciprocal(l_ref[...], approx=True)
        o_ref[...] = (acc_ref[...] * inv_l).astype(o_ref.dtype)


def pallas_flash_attention(qkv, B, N, heads, dim_head, scale):
    """qkv: (B*N, 3*heads*dim_head) fused projection -> (B*N, heads*dim_head).

    Heads / q / k / v are addressed through BlockSpec column blocks of width
    dim_head, so no transposes or reshapes are needed around this kernel.
    """
    inner = heads * dim_head
    assert qkv.shape == (B * N, 3 * inner)
    # Lane-dense head tiles. TODO(synk): dim_head % 128 != 0 (e.g. the module's
    # default dim_head=64) would need head-packed lane blocks; not implemented.
    assert dim_head % 128 == 0, "dim_head must be a multiple of 128 for lane-dense tiles"
    assert N % 8 == 0, "seq len must be a multiple of 8 (sublane tiling)"

    tq = _pick_tile(N, 128)     # q rows per step
    tkv = _pick_tile(N, 512)    # kv rows per step (online-softmax axis)
    nq, nkv = N // tq, N // tkv

    q_spec = pl.BlockSpec((tq, dim_head), lambda b, h, qi, ki: (b * nq + qi, h))
    k_spec = pl.BlockSpec((tkv, dim_head), lambda b, h, qi, ki: (b * nkv + ki, heads + h))
    v_spec = pl.BlockSpec((tkv, dim_head), lambda b, h, qi, ki: (b * nkv + ki, 2 * heads + h))
    o_spec = pl.BlockSpec((tq, dim_head), lambda b, h, qi, ki: (b * nq + qi, h))

    itemsize = jnp.dtype(qkv.dtype).itemsize
    cost = pl.CostEstimate(
        flops=4 * B * heads * N * N * dim_head,          # q@k^T and p@v
        transcendentals=B * heads * N * N,               # exp on the scores
        bytes_accessed=itemsize * (B * N * 3 * inner + B * N * inner),
    )

    return pl.pallas_call(
        functools.partial(_flash_attn_kernel, scale=scale),
        out_shape=jax.ShapeDtypeStruct((B * N, inner), qkv.dtype),
        grid=(B, heads, nq, nkv),
        in_specs=[q_spec, k_spec, v_spec],
        out_specs=o_spec,
        scratch_shapes=[
            pltpu.VMEM((tq, 1), jnp.float32),          # running max m
            pltpu.VMEM((tq, 1), jnp.float32),          # running sum l
            pltpu.VMEM((tq, dim_head), jnp.float32),   # output accumulator
        ],
        compiler_params=pltpu.CompilerParams(
            dimension_semantics=("parallel", "parallel", "parallel", "arbitrary")
        ),
        cost_estimate=cost,
    )(qkv, qkv, qkv)


# ---------------------------------------------------------------------------
# Forward pass (matches Attention.forward(x) with default args)
# ---------------------------------------------------------------------------

def attention_forward(x, params, *, heads, dim_head):
    B, N, D = x.shape
    scale = dim_head ** (-0.5)

    x2d = x.reshape(B * N, D)

    # Fused QKV projection: single pass over x2d, single tiled matmul kernel.
    qkv = pallas_linear(x2d, params["w_qkv"])                             # (B*N, 3*inner)

    # Flash attention straight on the projection layout (no transposes).
    attn_out = pallas_flash_attention(qkv, B, N, heads, dim_head, scale)  # (B*N, inner)

    # Output projection with bias.
    out = pallas_linear(attn_out, params["w_out"], params["b_out"])       # (B*N, D)
    return out.reshape(B, N, D)


attention_forward_jit = jax.jit(attention_forward, static_argnames=("heads", "dim_head"))


# ---------------------------------------------------------------------------
# Pure-JAX reference for verification
# ---------------------------------------------------------------------------

def attention_reference(x, params, heads, dim_head):
    B, N, D = x.shape
    inner = heads * dim_head
    scale = dim_head ** (-0.5)
    w_qkv = params["w_qkv"]
    q = x @ w_qkv[:, :inner]
    k = x @ w_qkv[:, inner:2 * inner]
    v = x @ w_qkv[:, 2 * inner:]

    def split_heads(t):
        return t.reshape(B, N, heads, dim_head).transpose(0, 2, 1, 3)

    q, k, v = map(split_heads, (q, k, v))
    dots = jnp.einsum("bhid,bhjd->bhij", q, k) * scale
    attn = jax.nn.softmax(dots, axis=-1)
    out = jnp.einsum("bhij,bhjd->bhid", attn, v)
    out = out.transpose(0, 2, 1, 3).reshape(B, N, inner)
    return (out @ params["w_out"] + params["b_out"]).reshape(B, N, D)


# ---------------------------------------------------------------------------
# Main
# ---------------------------------------------------------------------------

if __name__ == "__main__":
    # Small shapes consistent with the module. dim_head chosen as 128 so that
    # per-head tiles are lane-dense (multiple of 128).
    B, N, D = 2, 16, 32          # batch, seq, dim
    heads, dim_head = 2, 128     # inner_dim = 256
    inner = heads * dim_head

    key = jax.random.PRNGKey(0)
    k_x, k_qkv, k_o, k_b = jax.random.split(key, 4)

    x = jax.random.normal(k_x, (B, N, D), dtype=jnp.float32)

    # Weights stored as (in, out) == W.T of nn.Linear; q and kv weights fused.
    params = {
        "w_qkv": 0.02 * jax.random.normal(k_qkv, (D, 3 * inner), dtype=jnp.float32),
        "w_out": 0.02 * jax.random.normal(k_o, (inner, D), dtype=jnp.float32),
        "b_out": 0.02 * jax.random.normal(k_b, (1, D), dtype=jnp.float32),
    }

    # TODO(synk): Conv1d compress branch (compress_ratio > 1), mask/context_mask,
    # tie_attn_dim branch and dropout>0 are not exercised by the default forward
    # and are not implemented.

    out = attention_forward_jit(x, params, heads=heads, dim_head=dim_head)
    out = jax.block_until_ready(out)

    ref = attention_reference(x, params, heads, dim_head)
    assert out.shape == (B, N, D)
    # approx reciprocal in the softmax denominator -> slightly looser tolerance.
    assert jnp.allclose(out, ref, atol=1e-3, rtol=1e-3), "mismatch vs reference"

    print("KERNEL_OK")
</pallas_src>

<mosaic_0001>
module attributes {stable_mosaic.version = 11 : i64} {
  func.func @_linear_kernel(%arg0: i32, %arg1: i32, %arg2: i32, %arg3: memref<32x32xf32, #tpu.memory_space<vmem>>, %arg4: memref<32x256xf32, #tpu.memory_space<vmem>>, %arg5: memref<32x256xf32, #tpu.memory_space<vmem>>, %arg6: memref<32x256xf32, #tpu.memory_space<vmem>>) attributes {dimension_semantics = [#tpu.dimension_semantics<parallel>, #tpu.dimension_semantics<parallel>, #tpu.dimension_semantics<arbitrary>], iteration_bounds = array<i64: 1, 3, 1>, scalar_prefetch = 0 : i64, scratch_operands = 1 : i64, tpu.core_type = #tpu.core_type<tc>, window_params = [{transform_indices = @transform_0, window_bounds = array<i64: 32, 32>}, {transform_indices = @transform_1, window_bounds = array<i64: 32, 256>}, {transform_indices = @transform_2, window_bounds = array<i64: 32, 256>}]} {
    %c0_i32 = arith.constant 0 : i32
    %0 = arith.cmpi eq, %arg2, %c0_i32 : i32
    %1 = arith.extui %0 : i1 to i32
    %c0_i32_0 = arith.constant 0 : i32
    %2 = arith.cmpi ne, %1, %c0_i32_0 : i32
    scf.if %2 {
      %cst_10 = arith.constant 0.000000e+00 : f32
      %12 = vector.broadcast %cst_10 : f32 to vector<32x256xf32>
      %c0_11 = arith.constant 0 : index
      %c0_12 = arith.constant 0 : index
      %13 = vector.load %arg6[%c0_11, %c0_12] : memref<32x256xf32, #tpu.memory_space<vmem>>, vector<32x256xf32>
      tpu.vector_store %arg6[%c0_11, %c0_12], %12 {strides = array<i32>} : memref<32x256xf32, #tpu.memory_space<vmem>>, vector<32x256xf32>,
    } else {
    }
    %c0 = arith.constant 0 : index
    %c0_1 = arith.constant 0 : index
    %3 = vector.load %arg6[%c0, %c0_1] : memref<32x256xf32, #tpu.memory_space<vmem>>, vector<32x256xf32>
    %c0_2 = arith.constant 0 : index
    %c0_3 = arith.constant 0 : index
    %4 = vector.load %arg3[%c0_2, %c0_3] : memref<32x32xf32, #tpu.memory_space<vmem>>, vector<32x32xf32>
    %c0_4 = arith.constant 0 : index
    %c0_5 = arith.constant 0 : index
    %5 = vector.load %arg4[%c0_4, %c0_5] : memref<32x256xf32, #tpu.memory_space<vmem>>, vector<32x256xf32>
    %cst = arith.constant dense<0.000000e+00> : vector<32x256xf32>
    %6 = tpu.matmul %4, %5, %cst {dimension_numbers = #tpu.dot_dimension_numbers<[1], [0], [0], [1], [0, 0, 1, 1], [], []>} : vector<32x32xf32>, vector<32x256xf32>, vector<32x256xf32> -> vector<32x256xf32>
    %7 = arith.addf %3, %6 : vector<32x256xf32>
    %c0_6 = arith.constant 0 : index
    %c0_7 = arith.constant 0 : index
    %8 = vector.load %arg6[%c0_6, %c0_7] : memref<32x256xf32, #tpu.memory_space<vmem>>, vector<32x256xf32>
    tpu.vector_store %arg6[%c0_6, %c0_7], %7 {strides = array<i32>} : memref<32x256xf32, #tpu.memory_space<vmem>>, vector<32x256xf32>,
    %c0_i32_8 = arith.constant 0 : i32
    %9 = arith.cmpi eq, %arg2, %c0_i32_8 : i32
    %10 = arith.extui %9 : i1 to i32
    %c0_i32_9 = arith.constant 0 : i32
    %11 = arith.cmpi ne, %10, %c0_i32_9 : i32
    scf.if %11 {
      %c0_10 = arith.constant 0 : index
      %c0_11 = arith.constant 0 : index
      %12 = vector.load %arg6[%c0_10, %c0_11] : memref<32x256xf32, #tpu.memory_space<vmem>>, vector<32x256xf32>
      %c0_12 = arith.constant 0 : index
      %c0_13 = arith.constant 0 : index
      %13 = vector.load %arg5[%c0_12, %c0_13] : memref<32x256xf32, #tpu.memory_space<vmem>>, vector<32x256xf32>
      tpu.vector_store %arg5[%c0_12, %c0_13], %12 {strides = array<i32>} : memref<32x256xf32, #tpu.memory_space<vmem>>, vector<32x256xf32>,
    } else {
    }
    return
  }
  func.func @transform_0(%arg0: i32, %arg1: i32, %arg2: i32) -> (i32, i32) {
    %c0_i32 = arith.constant 0 : i32
    return %arg0, %arg2 : i32, i32
  }
  func.func @transform_1(%arg0: i32, %arg1: i32, %arg2: i32) -> (i32, i32) {
    %c0_i32 = arith.constant 0 : i32
    return %arg2, %arg1 : i32, i32
  }
  func.func @transform_2(%arg0: i32, %arg1: i32, %arg2: i32) -> (i32, i32) {
    %c0_i32 = arith.constant 0 : i32
    return %arg0, %arg1 : i32, i32
  }
}

module attributes {stable_mosaic.version = 11 : i64} {
  func.func @_linear_bias_kernel(%arg0: i32, %arg1: i32, %arg2: i32, %arg3: memref<32x256xf32, #tpu.memory_space<vmem>>, %arg4: memref<256x32xf32, #tpu.memory_space<vmem>>, %arg5: memref<1x32xf32, #tpu.memory_space<vmem>>, %arg6: memref<32x32xf32, #tpu.memory_space<vmem>>, %arg7: memref<32x32xf32, #tpu.memory_space<vmem>>) attributes {dimension_semantics = [#tpu.dimension_semantics<parallel>, #tpu.dimension_semantics<parallel>, #tpu.dimension_semantics<arbitrary>], iteration_bounds = array<i64: 1, 1, 1>, scalar_prefetch = 0 : i64, scratch_operands = 1 : i64, tpu.core_type = #tpu.core_type<tc>, window_params = [{transform_indices = @transform_0, window_bounds = array<i64: 32, 256>}, {transform_indices = @transform_1, window_bounds = array<i64: 256, 32>}, {transform_indices = @transform_2, window_bounds = array<i64: 1, 32>}, {transform_indices = @transform_3, window_bounds = array<i64: 32, 32>}]} {
    %c0_i32 = arith.constant 0 : i32
    %0 = arith.cmpi eq, %arg2, %c0_i32 : i32
    %1 = arith.extui %0 : i1 to i32
    %c0_i32_0 = arith.constant 0 : i32
    %2 = arith.cmpi ne, %1, %c0_i32_0 : i32
    scf.if %2 {
      %cst_10 = arith.constant 0.000000e+00 : f32
      %12 = vector.broadcast %cst_10 : f32 to vector<32x32xf32>
      %c0_11 = arith.constant 0 : index
      %c0_12 = arith.constant 0 : index
      %13 = vector.load %arg7[%c0_11, %c0_12] : memref<32x32xf32, #tpu.memory_space<vmem>>, vector<32x32xf32>
      tpu.vector_store %arg7[%c0_11, %c0_12], %12 {strides = array<i32>} : memref<32x32xf32, #tpu.memory_space<vmem>>, vector<32x32xf32>,
    } else {
    }
    %c0 = arith.constant 0 : index
    %c0_1 = arith.constant 0 : index
    %3 = vector.load %arg7[%c0, %c0_1] : memref<32x32xf32, #tpu.memory_space<vmem>>, vector<32x32xf32>
    %c0_2 = arith.constant 0 : index
    %c0_3 = arith.constant 0 : index
    %4 = vector.load %arg3[%c0_2, %c0_3] : memref<32x256xf32, #tpu.memory_space<vmem>>, vector<32x256xf32>
    %c0_4 = arith.constant 0 : index
    %c0_5 = arith.constant 0 : index
    %5 = vector.load %arg4[%c0_4, %c0_5] : memref<256x32xf32, #tpu.memory_space<vmem>>, vector<256x32xf32>
    %cst = arith.constant dense<0.000000e+00> : vector<32x32xf32>
    %6 = tpu.matmul %4, %5, %cst {dimension_numbers = #tpu.dot_dimension_numbers<[1], [0], [0], [1], [0, 0, 1, 1], [], []>} : vector<32x256xf32>, vector<256x32xf32>, vector<32x32xf32> -> vector<32x32xf32>
    %7 = arith.addf %3, %6 : vector<32x32xf32>
    %c0_6 = arith.constant 0 : index
    %c0_7 = arith.constant 0 : index
    %8 = vector.load %arg7[%c0_6, %c0_7] : memref<32x32xf32, #tpu.memory_space<vmem>>, vector<32x32xf32>
    tpu.vector_store %arg7[%c0_6, %c0_7], %7 {strides = array<i32>} : memref<32x32xf32, #tpu.memory_space<vmem>>, vector<32x32xf32>,
    %c0_i32_8 = arith.constant 0 : i32
    %9 = arith.cmpi eq, %arg2, %c0_i32_8 : i32
    %10 = arith.extui %9 : i1 to i32
    %c0_i32_9 = arith.constant 0 : i32
    %11 = arith.cmpi ne, %10, %c0_i32_9 : i32
    scf.if %11 {
      %c0_10 = arith.constant 0 : index
      %c0_11 = arith.constant 0 : index
      %12 = vector.load %arg7[%c0_10, %c0_11] : memref<32x32xf32, #tpu.memory_space<vmem>>, vector<32x32xf32>
      %c0_12 = arith.constant 0 : index
      %c0_13 = arith.constant 0 : index
      %13 = vector.load %arg5[%c0_12, %c0_13] : memref<1x32xf32, #tpu.memory_space<vmem>>, vector<1x32xf32>
      %14 = vector.broadcast %13 : vector<1x32xf32> to vector<32x32xf32>
      %15 = arith.addf %12, %14 : vector<32x32xf32>
      %c0_14 = arith.constant 0 : index
      %c0_15 = arith.constant 0 : index
      %16 = vector.load %arg6[%c0_14, %c0_15] : memref<32x32xf32, #tpu.memory_space<vmem>>, vector<32x32xf32>
      tpu.vector_store %arg6[%c0_14, %c0_15], %15 {strides = array<i32>} : memref<32x32xf32, #tpu.memory_space<vmem>>, vector<32x32xf32>,
    } else {
    }
    return
  }
  func.func @transform_0(%arg0: i32, %arg1: i32, %arg2: i32) -> (i32, i32) {
    %c0_i32 = arith.constant 0 : i32
    return %arg0, %arg2 : i32, i32
  }
  func.func @transform_1(%arg0: i32, %arg1: i32, %arg2: i32) -> (i32, i32) {
    %c0_i32 = arith.constant 0 : i32
    return %arg2, %arg1 : i32, i32
  }
  func.func @transform_2(%arg0: i32, %arg1: i32, %arg2: i32) -> (i32, i32) {
    %c0_i32 = arith.constant 0 : i32
    %c0_i32_0 = arith.constant 0 : i32
    return %c0_i32, %arg1 : i32, i32
  }
  func.func @transform_3(%arg0: i32, %arg1: i32, %arg2: i32) -> (i32, i32) {
    %c0_i32 = arith.constant 0 : i32
    return %arg0, %arg1 : i32, i32
  }
}

module attributes {stable_mosaic.version = 11 : i64} {
  func.func @_flash_attn_kernel(%arg0: i32, %arg1: i32, %arg2: i32, %arg3: i32, %arg4: memref<16x128xf32, #tpu.memory_space<vmem>>, %arg5: memref<16x128xf32, #tpu.memory_space<vmem>>, %arg6: memref<16x128xf32, #tpu.memory_space<vmem>>, %arg7: memref<16x128xf32, #tpu.memory_space<vmem>>, %arg8: memref<16x1xf32, #tpu.memory_space<vmem>>, %arg9: memref<16x1xf32, #tpu.memory_space<vmem>>, %arg10: memref<16x128xf32, #tpu.memory_space<vmem>>) attributes {dimension_semantics = [#tpu.dimension_semantics<parallel>, #tpu.dimension_semantics<parallel>, #tpu.dimension_semantics<parallel>, #tpu.dimension_semantics<arbitrary>], iteration_bounds = array<i64: 2, 2, 1, 1>, scalar_prefetch = 0 : i64, scratch_operands = 3 : i64, tpu.core_type = #tpu.core_type<tc>, window_params = [{transform_indices = @transform_0, window_bounds = array<i64: 16, 128>}, {transform_indices = @transform_1, window_bounds = array<i64: 16, 128>}, {transform_indices = @transform_2, window_bounds = array<i64: 16, 128>}, {transform_indices = @transform_3, window_bounds = array<i64: 16, 128>}]} {
    %c0_i32 = arith.constant 0 : i32
    %0 = arith.cmpi eq, %arg3, %c0_i32 : i32
    %1 = arith.extui %0 : i1 to i32
    %c0_i32_0 = arith.constant 0 : i32
    %2 = arith.cmpi ne, %1, %c0_i32_0 : i32
    scf.if %2 {
      %cst_24 = arith.constant 0xFF800000 : f32
      %34 = vector.broadcast %cst_24 : f32 to vector<16x1xf32>
      %c0_25 = arith.constant 0 : index
      %c0_26 = arith.constant 0 : index
      %35 = vector.load %arg8[%c0_25, %c0_26] : memref<16x1xf32, #tpu.memory_space<vmem>>, vector<16x1xf32>
      tpu.vector_store %arg8[%c0_25, %c0_26], %34 {strides = array<i32>} : memref<16x1xf32, #tpu.memory_space<vmem>>, vector<16x1xf32>,
      %cst_27 = arith.constant 0.000000e+00 : f32
      %36 = vector.broadcast %cst_27 : f32 to vector<16x1xf32>
      %c0_28 = arith.constant 0 : index
      %c0_29 = arith.constant 0 : index
      %37 = vector.load %arg9[%c0_28, %c0_29] : memref<16x1xf32, #tpu.memory_space<vmem>>, vector<16x1xf32>
      tpu.vector_store %arg9[%c0_28, %c0_29], %36 {strides = array<i32>} : memref<16x1xf32, #tpu.memory_space<vmem>>, vector<16x1xf32>,
      %cst_30 = arith.constant 0.000000e+00 : f32
      %38 = vector.broadcast %cst_30 : f32 to vector<16x128xf32>
      %c0_31 = arith.constant 0 : index
      %c0_32 = arith.constant 0 : index
      %39 = vector.load %arg10[%c0_31, %c0_32] : memref<16x128xf32, #tpu.memory_space<vmem>>, vector<16x128xf32>
      tpu.vector_store %arg10[%c0_31, %c0_32], %38 {strides = array<i32>} : memref<16x128xf32, #tpu.memory_space<vmem>>, vector<16x128xf32>,
    } else {
    }
    %c0 = arith.constant 0 : index
    %c0_1 = arith.constant 0 : index
    %3 = vector.load %arg4[%c0, %c0_1] : memref<16x128xf32, #tpu.memory_space<vmem>>, vector<16x128xf32>
    %cst = arith.constant 0.0883883461 : f32
    %4 = vector.broadcast %cst : f32 to vector<16x128xf32>
    %5 = arith.mulf %3, %4 : vector<16x128xf32>
    %c0_2 = arith.constant 0 : index
    %c0_3 = arith.constant 0 : index
    %6 = vector.load %arg5[%c0_2, %c0_3] : memref<16x128xf32, #tpu.memory_space<vmem>>, vector<16x128xf32>
    %cst_4 = arith.constant dense<0.000000e+00> : vector<16x16xf32>
    %7 = tpu.matmul %5, %6, %cst_4 {dimension_numbers = #tpu.dot_dimension_numbers<[1], [1], [0], [0], [0, 0, 1, 0], [], []>} : vector<16x128xf32>, vector<16x128xf32>, vector<16x16xf32> -> vector<16x16xf32>
    %c0_5 = arith.constant 0 : index
    %c0_6 = arith.constant 0 : index
    %8 = vector.load %arg8[%c0_5, %c0_6] : memref<16x1xf32, #tpu.memory_space<vmem>>, vector<16x1xf32>
    %cst_7 = arith.constant dense<0xFF800000> : vector<16xf32>
    %9 = vector.multi_reduction <maximumf>, %7, %cst_7 [1] : vector<16x16xf32> to vector<16xf32>
    %10 = vector.shape_cast %9 : vector<16xf32> to vector<16x1xf32>
    %11 = arith.maximumf %8, %10 : vector<16x1xf32>
    %12 = arith.subf %8, %11 : vector<16x1xf32>
    %13 = math.exp %12 : vector<16x1xf32>
    %14 = vector.broadcast %11 : vector<16x1xf32> to vector<16x16xf32>
    %15 = arith.subf %7, %14 : vector<16x16xf32>
    %16 = math.exp %15 : vector<16x16xf32>
    %c0_8 = arith.constant 0 : index
    %c0_9 = arith.constant 0 : index
    %17 = vector.load %arg9[%c0_8, %c0_9] : memref<16x1xf32, #tpu.memory_space<vmem>>, vector<16x1xf32>
    %18 = arith.mulf %13, %17 : vector<16x1xf32>
    %cst_10 = arith.constant dense<0.000000e+00> : vector<16xf32>
    %19 = vector.multi_reduction <add>, %16, %cst_10 [1] : vector<16x16xf32> to vector<16xf32>
    %20 = vector.shape_cast %19 : vector<16xf32> to vector<16x1xf32>
    %21 = arith.addf %18, %20 : vector<16x1xf32>
    %c0_11 = arith.constant 0 : index
    %c0_12 = arith.constant 0 : index
    %22 = vector.load %arg9[%c0_11, %c0_12] : memref<16x1xf32, #tpu.memory_space<vmem>>, vector<16x1xf32>
    tpu.vector_store %arg9[%c0_11, %c0_12], %21 {strides = array<i32>} : memref<16x1xf32, #tpu.memory_space<vmem>>, vector<16x1xf32>,
    %c0_13 = arith.constant 0 : index
    %c0_14 = arith.constant 0 : index
    %23 = vector.load %arg10[%c0_13, %c0_14] : memref<16x128xf32, #tpu.memory_space<vmem>>, vector<16x128xf32>
    %24 = vector.broadcast %13 : vector<16x1xf32> to vector<16x128xf32>
    %25 = arith.mulf %24, %23 : vector<16x128xf32>
    %c0_15 = arith.constant 0 : index
    %c0_16 = arith.constant 0 : index
    %26 = vector.load %arg6[%c0_15, %c0_16] : memref<16x128xf32, #tpu.memory_space<vmem>>, vector<16x128xf32>
    %cst_17 = arith.constant dense<0.000000e+00> : vector<16x128xf32>
    %27 = tpu.matmul %16, %26, %cst_17 {dimension_numbers = #tpu.dot_dimension_numbers<[1], [0], [0], [1], [0, 0, 1, 1], [], []>} : vector<16x16xf32>, vector<16x128xf32>, vector<16x128xf32> -> vector<16x128xf32>
    %28 = arith.addf %25, %27 : vector<16x128xf32>
    %c0_18 = arith.constant 0 : index
    %c0_19 = arith.constant 0 : index
    %29 = vector.load %arg10[%c0_18, %c0_19] : memref<16x128xf32, #tpu.memory_space<vmem>>, vector<16x128xf32>
    tpu.vector_store %arg10[%c0_18, %c0_19], %28 {strides = array<i32>} : memref<16x128xf32, #tpu.memory_space<vmem>>, vector<16x128xf32>,
    %c0_20 = arith.constant 0 : index
    %c0_21 = arith.constant 0 : index
    %30 = vector.load %arg8[%c0_20, %c0_21] : memref<16x1xf32, #tpu.memory_space<vmem>>, vector<16x1xf32>
    tpu.vector_store %arg8[%c0_20, %c0_21], %11 {strides = array<i32>} : memref<16x1xf32, #tpu.memory_space<vmem>>, vector<16x1xf32>,
    %c0_i32_22 = arith.constant 0 : i32
    %31 = arith.cmpi eq, %arg3, %c0_i32_22 : i32
    %32 = arith.extui %31 : i1 to i32
    %c0_i32_23 = arith.constant 0 : i32
    %33 = arith.cmpi ne, %32, %c0_i32_23 : i32
    scf.if %33 {
      %c0_24 = arith.constant 0 : index
      %c0_25 = arith.constant 0 : index
      %34 = vector.load %arg9[%c0_24, %c0_25] : memref<16x1xf32, #tpu.memory_space<vmem>>, vector<16x1xf32>
      %35 = tpu.reciprocal %34 {approx = true} : vector<16x1xf32> -> vector<16x1xf32>
      %c0_26 = arith.constant 0 : index
      %c0_27 = arith.constant 0 : index
      %36 = vector.load %arg10[%c0_26, %c0_27] : memref<16x128xf32, #tpu.memory_space<vmem>>, vector<16x128xf32>
      %37 = vector.broadcast %35 : vector<16x1xf32> to vector<16x128xf32>
      %38 = arith.mulf %36, %37 : vector<16x128xf32>
      %c0_28 = arith.constant 0 : index
      %c0_29 = arith.constant 0 : index
      %39 = vector.load %arg7[%c0_28, %c0_29] : memref<16x128xf32, #tpu.memory_space<vmem>>, vector<16x128xf32>
      tpu.vector_store %arg7[%c0_28, %c0_29], %38 {strides = array<i32>} : memref<16x128xf32, #tpu.memory_space<vmem>>, vector<16x128xf32>,
    } else {
    }
    return
  }
  func.func @transform_0(%arg0: i32, %arg1: i32, %arg2: i32, %arg3: i32) -> (i32, i32) {
    %c1_i32 = arith.constant 1 : i32
    %0 = arith.muli %arg0, %c1_i32 : i32
    %1 = arith.addi %0, %arg2 : i32
    %c0_i32 = arith.constant 0 : i32
    return %1, %arg1 : i32, i32
  }
  func.func @transform_1(%arg0: i32, %arg1: i32, %arg2: i32, %arg3: i32) -> (i32, i32) {
    %c1_i32 = arith.constant 1 : i32
    %0 = arith.muli %arg0, %c1_i32 : i32
    %1 = arith.addi %0, %arg3 : i32
    %c2_i32 = arith.constant 2 : i32
    %2 = arith.addi %c2_i32, %arg1 : i32
    %c0_i32 = arith.constant 0 : i32
    return %1, %2 : i32, i32
  }
  func.func @transform_2(%arg0: i32, %arg1: i32, %arg2: i32, %arg3: i32) -> (i32, i32) {
    %c1_i32 = arith.constant 1 : i32
    %0 = arith.muli %arg0, %c1_i32 : i32
    %1 = arith.addi %0, %arg3 : i32
    %c4_i32 = arith.constant 4 : i32
    %2 = arith.addi %c4_i32, %arg1 : i32
    %c0_i32 = arith.constant 0 : i32
    return %1, %2 : i32, i32
  }
  func.func @transform_3(%arg0: i32, %arg1: i32, %arg2: i32, %arg3: i32) -> (i32, i32) {
    %c1_i32 = arith.constant 1 : i32
    %0 = arith.muli %arg0, %c1_i32 : i32
    %1 = arith.addi %0, %arg2 : i32
    %c0_i32 = arith.constant 0 : i32
    return %1, %arg1 : i32, i32
  }
}

</mosaic_0001>

<llo_original>
// kernel: attention_forward.3
$region0: #{attention_forward.3}
  #allocation0 [shape = 'u32[]', space=smem, size = 0x4, offset = 0x4, fixed_abs, tag = 'smem constant byte address 0x4 - core index']
  #allocation1 [shape = 'u32[144,128]{1,0:T(1,128)}', space=vmem, size = 0x12000, scoped, tag = 'internal scratch']
  #allocation2 [shape = 'f32[32,256]{1,0:T(8,128)}', space=vmem, size = 0x8000, scoped, tag = 'scratch operand']
  %s0 = inlined_call_operand.hbm [shape: f32[32,32], index: 0, kind: input, shape index: {}]
  %s1 = inlined_call_operand.hbm [shape: f32[32,768], index: 1, kind: input, shape index: {}]
  %s2 = inlined_call_operand.vmem [shape: f32[32,768], index: 2, kind: output, shape index: {}]
  %s3 = sld [smem:[#allocation0]]
  $region76: #{attention_forward.3} parent=0
    _
  %s5 = ssub.s32 1, %s3
  %s6 = scalar_select 0, %s5, %s3
  $region1: #{attention_forward.3} parent=0
    #allocation3 [shape = 'u8[16384]{0}', space=vmem, size = 0x4000, scoped, tag = 'input window, operand 0, single buffered']
    #allocation4 [shape = 's32[2]{0}', space=sflag, size = 0x8, scoped, tag = 'scoped memory for attention_forward.3']
    #allocation5 [shape = 'u8[65536]{0}', space=vmem, size = 0x10000, scoped, tag = 'input window, operand 1']
    #allocation6 [shape = 's32[2]{0}', space=sflag, size = 0x8, scoped, tag = 'scoped memory for attention_forward.3']
    #allocation7 [shape = 'u8[65536]{0}', space=vmem, size = 0x10000, scoped, tag = 'output window, operand 0']
    %7 = vsyncpa [#allocation4], 0
    %8 = vsyncpa [#allocation6], 0
    %s9 = scalar_lea.sflag [#allocation6], 1
    %10 = vsyncpa %s9, 0
    loop: start=0, step=1, limit=5
    $region2: #{attention_forward.3} parent=1 // loop_pre_header
      _
    $region3: #{attention_forward.3} parent=1 // loop_header
      %s12 = sphi 0, %s16
      %p13 = scmp.ge.s32.totalorder %s12, 5
      %s19 = sphi 0, %s38
      %s20 = sphi 0, %s34
      %s21 = sphi 0, %s30
      %s22 = sphi 0, %s19
      %s23 = sphi 0, %s20
      %s24 = sphi 0, %s21
      %s25 = sphi 0, %s22
      %s26 = sphi 0, %s23
      %s27 = sphi 0, %s24
      %s43 = sphi 0, %s45
      %s46 = sphi 0, %s43
      %s47 = sphi 0, %s46
      %s63 = sphi 0, %s47
      %s71 = sphi 0, %s73
      %s74 = sphi 0, %s71
      %s75 = sphi 0, %s74
      %s91 = sphi 0, %s75
      %s99 = sphi 0, %s101
      %s102 = sphi 0, %s99
      %s103 = sphi 0, %s102
      %s119 = sphi 0, %s103
    $region4: #{attention_forward.3} parent=1 // loop_header_branch
      %15 = sbr.rel (%p13) target = $region8
    $region5: #{attention_forward.3} parent=1 // loop_body
      %s17 = ssub.s32 %s12, 1
      %s18 = ssub.s32 %s12, 2
      %s28 = sadd.s32 1, %s21
      %p29 = scmp.ge.s32.totalorder %s28, 1
      %s30 = scalar_select %p29, 0, %s28
      %s31 = sadd.s32 1, %s20
      %s32 = scalar_select %p29, %s31, %s20
      %p33 = scmp.ge.s32.totalorder %s32, 3
      %s34 = scalar_select %p33, 0, %s32
      %s35 = sadd.s32 1, %s19
      %s36 = scalar_select %p33, %s35, %s19
      %p37 = scmp.ge.s32.totalorder %s36, 1
      %s38 = scalar_select %p37, 0, %s36
      %s39 = ssub.s32 %s19, %s38
      %s40 = ssub.s32 %s21, %s30
      %s41 = sor.u32 %s39, %s40
      %p42 = scmp.eq.s32.totalorder %s41, 0
      %s44 = sadd.s32 %s43, 1
      %s45 = scalar_select %p42, %s43, %s44
      %p48 = pneg %p42
      %p49 = scmp.eq.s32.totalorder %s12, 2
      %p50 = por %p48, %p49
      %p51 = scmp.ne.s32.totalorder %s43, %s46
      %p52 = scmp.eq.s32.totalorder %s12, 0
      %p53 = por %p51, %p52
      %p54 = scmp.ne.s32.totalorder %s43, %s46
      %p55 = scmp.eq.s32.totalorder %s17, 2
      %p56 = por %p54, %p55
      %p57 = scmp.ne.s32.totalorder %s46, %s47
      %p58 = scmp.eq.s32.totalorder %s17, 0
      %p59 = por %p57, %p58
      %p60 = scmp.ne.s32.totalorder %s46, %s47
      %p61 = scmp.eq.s32.totalorder %s18, 2
      %p62 = por %p60, %p61
      %p64 = scmp.ne.s32.totalorder %s47, %s63
      %p65 = scmp.eq.s32.totalorder %s18, 0
      %p66 = por %p64, %p65
      %s67 = ssub.s32 %s21, %s30
      %s68 = ssub.s32 %s20, %s34
      %s69 = sor.u32 %s67, %s68
      %p70 = scmp.eq.s32.totalorder %s69, 0
      %s72 = sadd.s32 %s71, 1
      %s73 = scalar_select %p70, %s71, %s72
      %p76 = pneg %p70
      %p77 = scmp.eq.s32.totalorder %s12, 2
      %p78 = por %p76, %p77
      %p79 = scmp.ne.s32.totalorder %s71, %s74
      %p80 = scmp.eq.s32.totalorder %s12, 0
      %p81 = por %p79, %p80
      %p82 = scmp.ne.s32.totalorder %s71, %s74
      %p83 = scmp.eq.s32.totalorder %s17, 2
      %p84 = por %p82, %p83
      %p85 = scmp.ne.s32.totalorder %s74, %s75
      %p86 = scmp.eq.s32.totalorder %s17, 0
      %p87 = por %p85, %p86
      %p88 = scmp.ne.s32.totalorder %s74, %s75
      %p89 = scmp.eq.s32.totalorder %s18, 2
      %p90 = por %p88, %p89
      %p92 = scmp.ne.s32.totalorder %s75, %s91
      %p93 = scmp.eq.s32.totalorder %s18, 0
      %p94 = por %p92, %p93
      %s95 = ssub.s32 %s19, %s38
      %s96 = ssub.s32 %s20, %s34
      %s97 = sor.u32 %s95, %s96
      %p98 = scmp.eq.s32.totalorder %s97, 0
      %s100 = sadd.s32 %s99, 1
      %s101 = scalar_select %p98, %s99, %s100
      %p104 = pneg %p98
      %p105 = scmp.eq.s32.totalorder %s12, 2
      %p106 = por %p104, %p105
      %p107 = scmp.ne.s32.totalorder %s99, %s102
      %p108 = scmp.eq.s32.totalorder %s12, 0
      %p109 = por %p107, %p108
      %p110 = scmp.ne.s32.totalorder %s99, %s102
      %p111 = scmp.eq.s32.totalorder %s17, 2
      %p112 = por %p110, %p111
      %p113 = scmp.ne.s32.totalorder %s102, %s103
      %p114 = scmp.eq.s32.totalorder %s17, 0
      %p115 = por %p113, %p114
      %p116 = scmp.ne.s32.totalorder %s102, %s103
      %p117 = scmp.eq.s32.totalorder %s18, 2
      %p118 = por %p116, %p117
      %p120 = scmp.ne.s32.totalorder %s103, %s119
      %p121 = scmp.eq.s32.totalorder %s18, 0
      %p122 = por %p120, %p121
      %p123 = scmp.le.s32.totalorder 1, %s12
      %p124 = scmp.lt.s32.totalorder %s12, 4
      %p125 = pnand %p123, %p124
      %p126 = pneg %p125
      // Predicated region
      $region9: #{attention_forward.3} parent=5 // pred_check
        _
      $region10: #{attention_forward.3} parent=5 // pred_check_branch
        %128 = sbr.rel (%p125) target = $region12
      $region11: #{attention_forward.3} parent=5 // pred_region
        %s129 = ssub.s32 %s12, 1
        // Predicated region
        $region13: #{attention_forward.3} parent=11 // pred_check
          %p130 = pneg %p59
        $region14: #{attention_forward.3} parent=11 // pred_check_branch
          %132 = sbr.rel (%p130) target = $region16
        $region15: #{attention_forward.3} parent=11 // pred_region
          %s133 = smul.u32 4, %s22
          %s135 = ssub.s32 512, 512
          %136 = vsyncadd [#allocation4], %s135
          %s137 = sadd.s32 %s24, %s133
          %s138 = smul.addr %s137, 128
          %s139 = scalar_lea.hbm %s0, %s138
          %s140 = sshll.u32 [#allocation3], 4
          %s141 = int_to_ptr.vmem [resolvable:$true] %s140
          %146 = dma.hbm_to_vmem [thread:$0]  %s139, 512, %s141, [#allocation4], 128, 128, 8
        $region16: #{attention_forward.3} parent=11 // pred_fallthru
          _
      $region12: #{attention_forward.3} parent=5 // pred_fallthru
        _
      %p147 = scmp.lt.s32.totalorder %s12, 3
      // Predicated region
      $region17: #{attention_forward.3} parent=5 // pred_check
        %p148 = pneg %p147
      $region18: #{attention_forward.3} parent=5 // pred_check_branch
        %150 = sbr.rel (%p148) target = $region20
      $region19: #{attention_forward.3} parent=5 // pred_region
        // Predicated region
        $region21: #{attention_forward.3} parent=19 // pred_check
          %p151 = pneg %p81
        $region22: #{attention_forward.3} parent=19 // pred_check_branch
          %153 = sbr.rel (%p151) target = $region24
        $region23: #{attention_forward.3} parent=19 // pred_region
          %s154 = sand.u32 %s71, 1
          %s155 = scalar_lea.sflag [#allocation6], %s154
          %s156 = sand.u32 %s71, 1
          %s157 = smul.addr %s156, 64
          %s158 = scalar_lea.vmem [#allocation5], %s157
          %s159 = smul.u32 4, %s21
          %s160 = smul.u32 2, %s20
          %s162 = ssub.s32 1024, 1024
          %163 = vsyncadd %s155, %s162
          %s164 = smul.addr %s159, 6
          %s165 = sadd.s32 %s160, %s164
          %s166 = smul.addr %s165, 128
          %s167 = scalar_lea.hbm %s1, %s166
          %s168 = sshll.u32 %s158, 4
          %s169 = int_to_ptr.vmem [resolvable:$true] %s168
          %174 = dma.hbm_to_vmem [thread:$0]  %s167, 1024, %s169, %s155, 768, 256, 16
        $region24: #{attention_forward.3} parent=19 // pred_fallthru
          _
      $region20: #{attention_forward.3} parent=5 // pred_fallthru
        _
      %p175 = scmp.le.s32.totalorder 1, %s12
      %p176 = scmp.lt.s32.totalorder %s12, 4
      %p177 = pnand %p175, %p176
      %p178 = pneg %p177
      // Predicated region
      $region25: #{attention_forward.3} parent=5 // pred_check
        _
      $region26: #{attention_forward.3} parent=5 // pred_check_branch
        %180 = sbr.rel (%p177) target = $region28
      $region27: #{attention_forward.3} parent=5 // pred_region
        %s181 = ssub.s32 %s12, 1
        // Predicated region
        $region29: #{attention_forward.3} parent=27 // pred_check
          %p182 = pneg %p59
        $region30: #{attention_forward.3} parent=27 // pred_check_branch
          %184 = sbr.rel (%p182) target = $region32
        $region31: #{attention_forward.3} parent=27 // pred_region
          %185 = dma.done [#allocation4], 512
        $region32: #{attention_forward.3} parent=27 // pred_fallthru
          _
        %s186 = sand.u32 %s74, 1
        %s187 = scalar_lea.sflag [#allocation6], %s186
        %s188 = sand.u32 %s74, 1
        %s189 = smul.addr %s188, 64
        %s190 = scalar_lea.vmem [#allocation5], %s189
        // Predicated region
        $region33: #{attention_forward.3} parent=27 // pred_check
          %p191 = pneg %p87
        $region34: #{attention_forward.3} parent=27 // pred_check_branch
          %193 = sbr.rel (%p191) target = $region36
        $region35: #{attention_forward.3} parent=27 // pred_region
          %194 = dma.done %s187, 1024
        $region36: #{attention_forward.3} parent=27 // pred_fallthru
          _
        %p195 = pneg %p59
        %p196 = pneg %p56
        %s197 = sand.u32 %s74, 1
        %s198 = scalar_lea.sflag [#allocation6], %s197
        %s199 = sand.u32 %s74, 1
        %s200 = smul.addr %s199, 64
        %s201 = scalar_lea.vmem [#allocation5], %s200
        %p202 = pneg %p87
        %p203 = pneg %p84
        %p204 = pneg %p115
        %p205 = pneg %p112
        %s206 = sand.u32 %s102, 1
        %s207 = sand.u32 %s102, 1
        %s208 = smul.addr %s207, 64
        %s209 = scalar_lea.vmem [#allocation7], %s208
        %s210 = smul.u32 4, %s22
        %s211 = smul.u32 4, %s24
        %s212 = smul.u32 2, %s23
        %s213 = smul.u32 4, %s22
        %s214 = smul.u32 2, %s23
        %p215 = scmp.eq.s32.totalorder %s24, 0
        // Predicated region
        $region37: #{attention_forward.3} parent=27 // pred_check
          %p216 = pneg %p215
        $region38: #{attention_forward.3} parent=27 // pred_check_branch
          %218 = sbr.rel (%p216) target = $region40
        $region39: #{attention_forward.3} parent=27 // pred_region
          %219 = vst [vmem:[#allocation2] sm:$0xff] 0.0
          %220 = vst [vmem:[#allocation2 + $0x8] sm:$0xff] 0.0
          %221 = vst [vmem:[#allocation2 + $0x10] sm:$0xff] 0.0
          %222 = vst [vmem:[#allocation2 + $0x18] sm:$0xff] 0.0
          %223 = vst [vmem:[#allocation2 + $0x20] sm:$0xff] 0.0
          %224 = vst [vmem:[#allocation2 + $0x28] sm:$0xff] 0.0
          %225 = vst [vmem:[#allocation2 + $0x30] sm:$0xff] 0.0
          %226 = vst [vmem:[#allocation2 + $0x38] sm:$0xff] 0.0
        $region40: #{attention_forward.3} parent=27 // pred_fallthru
          _
        %v227 = vld [vmem:[#allocation2] sm:$0xff]
        %v228 = vld [vmem:[#allocation2 + $0x8] sm:$0xff]
        %v229 = vld [vmem:[#allocation2 + $0x10] sm:$0xff]
        %v230 = vld [vmem:[#allocation2 + $0x18] sm:$0xff]
        %v231 = vld [vmem:[#allocation2 + $0x20] sm:$0xff]
        %v232 = vld [vmem:[#allocation2 + $0x28] sm:$0xff]
        %v233 = vld [vmem:[#allocation2 + $0x30] sm:$0xff]
        %v234 = vld [vmem:[#allocation2 + $0x38] sm:$0xff]
        %v235 = vld [vmem:[#allocation3] sm:$0xff]
        %v236 = vld [vmem:[#allocation3 + $0x8] sm:$0xff]
        %v237 = vld [vmem:[#allocation3 + $0x10] sm:$0xff]
        %v238 = vld [vmem:[#allocation3 + $0x18] sm:$0xff]
        %v239 = vld [vmem:[%s190] sm:$0xff]
        %v240 = vld [vmem:[%s190 + $0x8] sm:$0xff]
        %v241 = vld [vmem:[%s190 + $0x10] sm:$0xff]
        %v242 = vld [vmem:[%s190 + $0x18] sm:$0xff]
        %v243 = vld [vmem:[%s190 + $0x20] sm:$0xff]
        %v244 = vld [vmem:[%s190 + $0x28] sm:$0xff]
        %v245 = vld [vmem:[%s190 + $0x30] sm:$0xff]
        %v246 = vld [vmem:[%s190 + $0x38] sm:$0xff]
        %vm247 = vcmask 261120
        %v249 = vsel %vm247, %v235, 0
        %v252 = vsel %vm247, %v236, 0
        %v255 = vsel %vm247, %v237, 0
        %v258 = vsel %vm247, %v238, 0
        %260 = vmatprep.subr.mxu0 0.0
        %261 = vmatpush1.msra.mxu0 0.0
        %262 = vmatprep.subr.mxu0 0.0
        %263 = vmatpush1.msra.mxu0 0.0
        %264 = vmatprep.subr.mxu0 0.0
        %265 = vmatpush1.msra.mxu0 0.0
        %266 = vmatprep.subr.mxu0 0.0
        %267 = vmatpush1.msra.mxu0 0.0
        %268 = vmatprep.subr.mxu0 0.0
        %269 = vmatpush1.msra.mxu0 0.0
        %270 = vmatprep.subr.mxu0 0.0
        %271 = vmatpush1.msra.mxu0 0.0
        %272 = vmatprep.subr.mxu0 0.0
        %273 = vmatpush1.msra.mxu0 0.0
        %274 = vmatprep.subr.mxu0 0.0
        %275 = vmatpush1.msra.mxu0 0.0
        %276 = vmatprep.subr.mxu0 0.0
        %277 = vmatpush1.msra.mxu0 0.0
        %278 = vmatprep.subr.mxu0 0.0
        %279 = vmatpush1.msra.mxu0 0.0
        %280 = vmatprep.subr.mxu0 0.0
        %281 = vmatpush1.msra.mxu0 0.0
        %282 = vmatprep.subr.mxu0 0.0
        %283 = vmatpush1.msra.mxu0 0.0
        %284 = vmatprep.subr.mxu0 %v246
        %285 = vmatpush1.msra.mxu0 %v245
        %286 = vmatprep.subr.mxu0 %v244
        %287 = vmatpush1.msra.mxu0 %v243
        %288 = vmatprep.subr.mxu0 %v242
        %289 = vmatpush1.msra.mxu0 %v241
        %290 = vmatprep.subr.mxu0 %v240
        %291 = vmatpush1.msra.mxu0 %v239
        %292 = vmatprep.subr.mxu0 0.0
        %293 = vmatpush2.msra.mxu0 0.0
        %294 = vmatprep.subr.mxu0 0.0
        %295 = vmatpush2.msra.mxu0 0.0
        %296 = vmatprep.subr.mxu0 0.0
        %297 = vmatpush2.msra.mxu0 0.0
        %298 = vmatprep.subr.mxu0 0.0
        %299 = vmatpush2.msra.mxu0 0.0
        %300 = vmatprep.subr.mxu0 0.0
        %301 = vmatpush2.msra.mxu0 0.0
        %302 = vmatprep.subr.mxu0 0.0
        %303 = vmatpush2.msra.mxu0 0.0
        %304 = vmatprep.subr.mxu0 0.0
        %305 = vmatpush2.msra.mxu0 0.0
        %306 = vmatprep.subr.mxu0 0.0
        %307 = vmatpush2.msra.mxu0 0.0
        %308 = vmatprep.subr.mxu0 0.0
        %309 = vmatpush2.msra.mxu0 0.0
        %310 = vmatprep.subr.mxu0 0.0
        %311 = vmatpush2.msra.mxu0 0.0
        %312 = vmatprep.subr.mxu0 0.0
        %313 = vmatpush2.msra.mxu0 0.0
        %314 = vmatprep.subr.mxu0 0.0
        %315 = vmatpush2.msra.mxu0 0.0
        %316 = vmatprep.subr.mxu0 0.0
        %317 = vmatpush2.msra.mxu0 0.0
        %318 = vmatprep.subr.mxu0 0.0
        %319 = vmatpush2.msra.mxu0 0.0
        %320 = vmatprep.subr.mxu0 0.0
        %321 = vmatpush2.msra.mxu0 0.0
        %322 = vmatprep.subr.mxu0 0.0
        %323 = vmatpush2.msra.mxu0 0.0
        %324 = vmatprep.mubr.f32.mxu0 0.0
        %325 = vmatmul.mubr.f32.gmra.mxu0 %v249
        %v326 = vpop.f32.mrf.mxu0
        %v327 = vadd.f32 0.0, %v326
        %v328 = vpop.f32.mrf.mxu0
        %v329 = vadd.f32 0.0, %v328
        %330 = vmatprep.mubr.f32.mxu0 0.0
        %331 = vmatmul.mubr.f32.gmra.mxu0 %v252
        %v332 = vpop.f32.mrf.mxu0
        %v333 = vadd.f32 0.0, %v332
        %v334 = vpop.f32.mrf.mxu0
        %v335 = vadd.f32 0.0, %v334
        %336 = vmatprep.mubr.f32.mxu0 0.0
        %337 = vmatmul.mubr.f32.gmra.mxu0 %v255
        %v338 = vpop.f32.mrf.mxu0
        %v339 = vadd.f32 0.0, %v338
        %v340 = vpop.f32.mrf.mxu0
        %v341 = vadd.f32 0.0, %v340
        %342 = vmatprep.mubr.f32.mxu0 0.0
        %343 = vmatmul.mubr.f32.gmra.mxu0 %v258
        %v344 = vpop.f32.mrf.mxu0
        %v345 = vadd.f32 0.0, %v344
        %v346 = vpop.f32.mrf.mxu0
        %v347 = vadd.f32 0.0, %v346
        %348 = vdwg.mxu0
        %v349 = vadd.f32 %v227, %v327
        %v350 = vadd.f32 %v228, %v329
        %v351 = vadd.f32 %v229, %v333
        %v352 = vadd.f32 %v230, %v335
        %v353 = vadd.f32 %v231, %v339
        %v354 = vadd.f32 %v232, %v341
        %v355 = vadd.f32 %v233, %v345
        %v356 = vadd.f32 %v234, %v347
        %357 = vst [vmem:[#allocation2] sm:$0xff] %v349
        %358 = vst [vmem:[#allocation2 + $0x8] sm:$0xff] %v350
        %359 = vst [vmem:[#allocation2 + $0x10] sm:$0xff] %v351
        %360 = vst [vmem:[#allocation2 + $0x18] sm:$0xff] %v352
        %361 = vst [vmem:[#allocation2 + $0x20] sm:$0xff] %v353
        %362 = vst [vmem:[#allocation2 + $0x28] sm:$0xff] %v354
        %363 = vst [vmem:[#allocation2 + $0x30] sm:$0xff] %v355
        %364 = vst [vmem:[#allocation2 + $0x38] sm:$0xff] %v356
        // Predicated region
        $region41: #{attention_forward.3} parent=27 // pred_check
          %p365 = pneg %p215
        $region42: #{attention_forward.3} parent=27 // pred_check_branch
          %367 = sbr.rel (%p365) target = $region44
        $region43: #{attention_forward.3} parent=27 // pred_region
          %v368 = vld [vmem:[#allocation2] sm:$0xff]
          %v369 = vld [vmem:[#allocation2 + $0x8] sm:$0xff]
          %v370 = vld [vmem:[#allocation2 + $0x10] sm:$0xff]
          %v371 = vld [vmem:[#allocation2 + $0x18] sm:$0xff]
          %v372 = vld [vmem:[#allocation2 + $0x20] sm:$0xff]
          %v373 = vld [vmem:[#allocation2 + $0x28] sm:$0xff]
          %v374 = vld [vmem:[#allocation2 + $0x30] sm:$0xff]
          %v375 = vld [vmem:[#allocation2 + $0x38] sm:$0xff]
          %376 = vst [vmem:[%s209] sm:$0xff] %v368
          %377 = vst [vmem:[%s209 + $0x8] sm:$0xff] %v369
          %378 = vst [vmem:[%s209 + $0x10] sm:$0xff] %v370
          %379 = vst [vmem:[%s209 + $0x18] sm:$0xff] %v371
          %380 = vst [vmem:[%s209 + $0x20] sm:$0xff] %v372
          %381 = vst [vmem:[%s209 + $0x28] sm:$0xff] %v373
          %382 = vst [vmem:[%s209 + $0x30] sm:$0xff] %v374
          %383 = vst [vmem:[%s209 + $0x38] sm:$0xff] %v375
        $region44: #{attention_forward.3} parent=27 // pred_fallthru
          _
        %s384 = sand.u32 %s102, 1
        %s385 = sand.u32 %s102, 1
        %s386 = smul.addr %s385, 64
        %s387 = scalar_lea.vmem [#allocation7], %s386
        // Predicated region
        $region45: #{attention_forward.3} parent=27 // pred_check
          %p388 = pneg %p112
        $region46: #{attention_forward.3} parent=27 // pred_check_branch
          %390 = sbr.rel (%p388) target = $region48
        $region47: #{attention_forward.3} parent=27 // pred_region
          %s391 = smul.u32 4, %s22
          %s392 = smul.u32 2, %s23
          %s393 = smul.addr %s391, 6
          %s394 = sadd.s32 %s392, %s393
          %s395 = smul.addr %s394, 8
          %s396 = scalar_lea.vmem %s2, %s395
          // Predicated region
          $region49: #{attention_forward.3} parent=47 // pred_check
            _
          $region50: #{attention_forward.3} parent=47 // pred_check_branch
            %398 = sbr.rel (0) target = $region52
          $region51: #{attention_forward.3} parent=47 // pred_region
            // Predicated region
            $region53: #{attention_forward.3} parent=51 // pred_check
              _
            $region54: #{attention_forward.3} parent=51 // pred_check_branch
              %400 = sbr.rel (0) target = $region56
            $region55: #{attention_forward.3} parent=51 // pred_region
              loop: start=0, step=1, limit=1
              $region57: #{attention_forward.3} parent=55 // loop_pre_header
                _
              $region58: #{attention_forward.3} parent=55 // loop_header
                %s402 = sphi 0, %s406
                %p403 = scmp.ge.s32.totalorder %s402, 1
                %s407 = sphi %s387, %s387
                %s408 = sphi %s396, %s396
              $region59: #{attention_forward.3} parent=55 // loop_header_branch
                %405 = sbr.rel (%p403) target = $region63
              $region60: #{attention_forward.3} parent=55 // loop_body
                %v409 = vld [vmem:[%s407] sm:$0xff]
                %410 = vst [vmem:[%s408] sm:$0xff] %v409
                %v411 = vld [vmem:[%s407 + $0x8] sm:$0xff]
                %412 = vst [vmem:[%s408 + $0x8] sm:$0xff] %v411
                %v413 = vld [vmem:[%s407 + $0x10] sm:$0xff]
                %414 = vst [vmem:[%s408 + $0x30] sm:$0xff] %v413
                %v415 = vld [vmem:[%s407 + $0x18] sm:$0xff]
                %416 = vst [vmem:[%s408 + $0x38] sm:$0xff] %v415
                %v417 = vld [vmem:[%s407 + $0x20] sm:$0xff]
                %418 = vst [vmem:[%s408 + $0x60] sm:$0xff] %v417
                %v419 = vld [vmem:[%s407 + $0x28] sm:$0xff]
                %420 = vst [vmem:[%s408 + $0x68] sm:$0xff] %v419
                %v421 = vld [vmem:[%s407 + $0x30] sm:$0xff]
                %422 = vst [vmem:[%s408 + $0x90] sm:$0xff] %v421
                %v423 = vld [vmem:[%s407 + $0x38] sm:$0xff]
                %424 = vst [vmem:[%s408 + $0x98] sm:$0xff] %v423
              $region61: #{attention_forward.3} parent=55 // loop_footer
                %s406 = sadd.s32 1, %s402
              $region62: #{attention_forward.3} parent=55 // loop_footer_branch
                %401 = sbr.rel target = $region58
              $region63: #{attention_forward.3} parent=55 // loop_exit
                _
            $region56: #{attention_forward.3} parent=51 // pred_fallthru
              _
            // Predicated region
            $region64: #{attention_forward.3} parent=51 // pred_check
              _
            $region65: #{attention_forward.3} parent=51 // pred_check_branch
              %426 = sbr.rel target = $region67
            $region66: #{attention_forward.3} parent=51 // pred_region
              _
            $region67: #{attention_forward.3} parent=51 // pred_fallthru
              _
          $region52: #{attention_forward.3} parent=47 // pred_fallthru
            _
          %427 = vnop
        $region48: #{attention_forward.3} parent=27 // pred_fallthru
          _
      $region28: #{attention_forward.3} parent=5 // pred_fallthru
        _
      %p428 = scmp.le.s32.totalorder 2, %s12
      // Predicated region
      $region68: #{attention_forward.3} parent=5 // pred_check
        %p429 = pneg %p428
      $region69: #{attention_forward.3} parent=5 // pred_check_branch
        %431 = sbr.rel (%p429) target = $region71
      $region70: #{attention_forward.3} parent=5 // pred_region
        %s432 = ssub.s32 %s12, 2
        // Predicated region
        $region72: #{attention_forward.3} parent=70 // pred_check
          %p433 = pneg %p118
        $region73: #{attention_forward.3} parent=70 // pred_check_branch
          %435 = sbr.rel (%p433) target = $region75
        $region74: #{attention_forward.3} parent=70 // pred_region
          %s436 = sand.u32 %s103, 1
          %s437 = sand.u32 %s103, 1
          %s438 = smul.addr %s437, 64
          %s439 = scalar_lea.vmem [#allocation7], %s438
        $region75: #{attention_forward.3} parent=70 // pred_fallthru
          _
      $region71: #{attention_forward.3} parent=5 // pred_fallthru
        _
    $region6: #{attention_forward.3} parent=1 // loop_footer
      %s16 = sadd.s32 1, %s12
    $region7: #{attention_forward.3} parent=1 // loop_footer_branch
      %11 = sbr.rel target = $region3
    $region8: #{attention_forward.3} parent=1 // loop_exit
      _
    %440 = vsyncpa [#allocation4], 1
    %s441 = scalar_lea.sflag [#allocation4], 1
    %442 = vsyncpa %s441, 1
    %443 = vsyncpa [#allocation6], 1
    %s444 = scalar_lea.sflag [#allocation6], 1
    %445 = vsyncpa %s444, 1

// kernel: attention_forward.5
$region0: #{attention_forward.5}
  #allocation0 [shape = 'u32[]', space=smem, size = 0x4, offset = 0x4, fixed_abs, tag = 'smem constant byte address 0x4 - core index']
  #allocation1 [shape = 'u32[144,128]{1,0:T(1,128)}', space=vmem, size = 0x12000, scoped, tag = 'internal scratch']
  #allocation2 [shape = 'f32[32,32]{1,0:T(8,128)}', space=vmem, size = 0x4000, scoped, tag = 'scratch operand']
  %s0 = inlined_call_operand.vmem [shape: f32[32,256], index: 0, kind: input, shape index: {}]
  %s1 = inlined_call_operand.vmem [shape: f32[256,32], index: 1, kind: input, shape index: {}]
  %s2 = inlined_call_operand.vmem [shape: f32[1,32], index: 2, kind: input, shape index: {}]
  %s3 = inlined_call_operand.hbm [shape: f32[32,32], index: 3, kind: output, shape index: {}]
  %s4 = sld [smem:[#allocation0]]
  $region30: #{attention_forward.5} parent=0
    _
  %s6 = ssub.s32 1, %s4
  %s7 = scalar_select 0, %s6, %s4
  $region1: #{attention_forward.5} parent=0
    #allocation3 [shape = 'u8[16384]{0}', space=vmem, size = 0x4000, scoped, tag = 'output window, operand 0, single buffered']
    #allocation4 [shape = 's32[1]{0}', space=sflag, size = 0x4, scoped, tag = 'scoped memory for attention_forward.5']
    %8 = vsyncpa [#allocation4], 0
    // Predicated region
    $region2: #{attention_forward.5} parent=1 // pred_check
      _
    $region3: #{attention_forward.5} parent=1 // pred_check_branch
      %10 = sbr.rel (0) target = $region5
    $region4: #{attention_forward.5} parent=1 // pred_region
      _
    $region5: #{attention_forward.5} parent=1 // pred_fallthru
      _
    // Predicated region
    $region6: #{attention_forward.5} parent=1 // pred_check
      _
    $region7: #{attention_forward.5} parent=1 // pred_check_branch
      %12 = sbr.rel (0) target = $region9
    $region8: #{attention_forward.5} parent=1 // pred_region
      _
    $region9: #{attention_forward.5} parent=1 // pred_fallthru
      _
    // Predicated region
    $region10: #{attention_forward.5} parent=1 // pred_check
      _
    $region11: #{attention_forward.5} parent=1 // pred_check_branch
      %14 = sbr.rel (0) target = $region13
    $region12: #{attention_forward.5} parent=1 // pred_region
      _
    $region13: #{attention_forward.5} parent=1 // pred_fallthru
      _
    %p15 = scmp.eq.s32.totalorder 0, 0
    // Predicated region
    $region14: #{attention_forward.5} parent=1 // pred_check
      %p16 = pneg %p15
    $region15: #{attention_forward.5} parent=1 // pred_check_branch
      %18 = sbr.rel (%p16) target = $region17
    $region16: #{attention_forward.5} parent=1 // pred_region
      %vm19 = vcmask 261120
      %20 = vst.msk [vmem:[#allocation2] sm:$0xff] %vm19, 0.0
      %21 = vst.msk [vmem:[#allocation2 + $0x8] sm:$0xff] %vm19, 0.0
      %22 = vst.msk [vmem:[#allocation2 + $0x10] sm:$0xff] %vm19, 0.0
      %23 = vst.msk [vmem:[#allocation2 + $0x18] sm:$0xff] %vm19, 0.0
    $region17: #{attention_forward.5} parent=1 // pred_fallthru
      _
    %v24 = vld [vmem:[#allocation2] sm:$0xff]
    %v25 = vld [vmem:[#allocation2 + $0x8] sm:$0xff]
    %v26 = vld [vmem:[#allocation2 + $0x10] sm:$0xff]
    %v27 = vld [vmem:[#allocation2 + $0x18] sm:$0xff]
    %v28 = vld [vmem:[%s0] sm:$0xff]
    %v29 = vld [vmem:[%s0 + $0x8] sm:$0xff]
    %v30 = vld [vmem:[%s0 + $0x10] sm:$0xff]
    %v31 = vld [vmem:[%s0 + $0x18] sm:$0xff]
    %v32 = vld [vmem:[%s0 + $0x20] sm:$0xff]
    %v33 = vld [vmem:[%s0 + $0x28] sm:$0xff]
    %v34 = vld [vmem:[%s0 + $0x30] sm:$0xff]
    %v35 = vld [vmem:[%s0 + $0x38] sm:$0xff]
    %v36 = vld [vmem:[%s1] sm:$0xff]
    %v37 = vld [vmem:[%s1 + $0x8] sm:$0xff]
    %v38 = vld [vmem:[%s1 + $0x10] sm:$0xff]
    %v39 = vld [vmem:[%s1 + $0x18] sm:$0xff]
    %v40 = vld [vmem:[%s1 + $0x20] sm:$0xff]
    %v41 = vld [vmem:[%s1 + $0x28] sm:$0xff]
    %v42 = vld [vmem:[%s1 + $0x30] sm:$0xff]
    %v43 = vld [vmem:[%s1 + $0x38] sm:$0xff]
    %v44 = vld [vmem:[%s1 + $0x40] sm:$0xff]
    %v45 = vld [vmem:[%s1 + $0x48] sm:$0xff]
    %v46 = vld [vmem:[%s1 + $0x50] sm:$0xff]
    %v47 = vld [vmem:[%s1 + $0x58] sm:$0xff]
    %v48 = vld [vmem:[%s1 + $0x60] sm:$0xff]
    %v49 = vld [vmem:[%s1 + $0x68] sm:$0xff]
    %v50 = vld [vmem:[%s1 + $0x70] sm:$0xff]
    %v51 = vld [vmem:[%s1 + $0x78] sm:$0xff]
    %v52 = vld [vmem:[%s1 + $0x80] sm:$0xff]
    %v53 = vld [vmem:[%s1 + $0x88] sm:$0xff]
    %v54 = vld [vmem:[%s1 + $0x90] sm:$0xff]
    %v55 = vld [vmem:[%s1 + $0x98] sm:$0xff]
    %v56 = vld [vmem:[%s1 + $0xa0] sm:$0xff]
    %v57 = vld [vmem:[%s1 + $0xa8] sm:$0xff]
    %v58 = vld [vmem:[%s1 + $0xb0] sm:$0xff]
    %v59 = vld [vmem:[%s1 + $0xb8] sm:$0xff]
    %v60 = vld [vmem:[%s1 + $0xc0] sm:$0xff]
    %v61 = vld [vmem:[%s1 + $0xc8] sm:$0xff]
    %v62 = vld [vmem:[%s1 + $0xd0] sm:$0xff]
    %v63 = vld [vmem:[%s1 + $0xd8] sm:$0xff]
    %v64 = vld [vmem:[%s1 + $0xe0] sm:$0xff]
    %v65 = vld [vmem:[%s1 + $0xe8] sm:$0xff]
    %v66 = vld [vmem:[%s1 + $0xf0] sm:$0xff]
    %v67 = vld [vmem:[%s1 + $0xf8] sm:$0xff]
    %68 = vmatprep.subr.mxu0 0.0
    %69 = vmatpush1.msra.mxu0 %v51
    %70 = vmatprep.subr.mxu0 0.0
    %71 = vmatpush1.msra.mxu0 %v50
    %72 = vmatprep.subr.mxu0 0.0
    %73 = vmatpush1.msra.mxu0 %v49
    %74 = vmatprep.subr.mxu0 0.0
    %75 = vmatpush1.msra.mxu0 %v48
    %76 = vmatprep.subr.mxu0 0.0
    %77 = vmatpush1.msra.mxu0 %v47
    %78 = vmatprep.subr.mxu0 0.0
    %79 = vmatpush1.msra.mxu0 %v46
    %80 = vmatprep.subr.mxu0 0.0
    %81 = vmatpush1.msra.mxu0 %v45
    %82 = vmatprep.subr.mxu0 0.0
    %83 = vmatpush1.msra.mxu0 %v44
    %84 = vmatprep.subr.mxu0 0.0
    %85 = vmatpush1.msra.mxu0 %v43
    %86 = vmatprep.subr.mxu0 0.0
    %87 = vmatpush1.msra.mxu0 %v42
    %88 = vmatprep.subr.mxu0 0.0
    %89 = vmatpush1.msra.mxu0 %v41
    %90 = vmatprep.subr.mxu0 0.0
    %91 = vmatpush1.msra.mxu0 %v40
    %92 = vmatprep.subr.mxu0 0.0
    %93 = vmatpush1.msra.mxu0 %v39
    %94 = vmatprep.subr.mxu0 0.0
    %95 = vmatpush1.msra.mxu0 %v38
    %96 = vmatprep.subr.mxu0 0.0
    %97 = vmatpush1.msra.mxu0 %v37
    %98 = vmatprep.subr.mxu0 0.0
    %99 = vmatpush1.msra.mxu0 %v36
    %100 = vmatprep.subr.mxu0 0.0
    %101 = vmatpush2.msra.mxu0 %v67
    %102 = vmatprep.subr.mxu0 0.0
    %103 = vmatpush2.msra.mxu0 %v66
    %104 = vmatprep.subr.mxu0 0.0
    %105 = vmatpush2.msra.mxu0 %v65
    %106 = vmatprep.subr.mxu0 0.0
    %107 = vmatpush2.msra.mxu0 %v64
    %108 = vmatprep.subr.mxu0 0.0
    %109 = vmatpush2.msra.mxu0 %v63
    %110 = vmatprep.subr.mxu0 0.0
    %111 = vmatpush2.msra.mxu0 %v62
    %112 = vmatprep.subr.mxu0 0.0
    %113 = vmatpush2.msra.mxu0 %v61
    %114 = vmatprep.subr.mxu0 0.0
    %115 = vmatpush2.msra.mxu0 %v60
    %116 = vmatprep.subr.mxu0 0.0
    %117 = vmatpush2.msra.mxu0 %v59
    %118 = vmatprep.subr.mxu0 0.0
    %119 = vmatpush2.msra.mxu0 %v58
    %120 = vmatprep.subr.mxu0 0.0
    %121 = vmatpush2.msra.mxu0 %v57
    %122 = vmatprep.subr.mxu0 0.0
    %123 = vmatpush2.msra.mxu0 %v56
    %124 = vmatprep.subr.mxu0 0.0
    %125 = vmatpush2.msra.mxu0 %v55
    %126 = vmatprep.subr.mxu0 0.0
    %127 = vmatpush2.msra.mxu0 %v54
    %128 = vmatprep.subr.mxu0 0.0
    %129 = vmatpush2.msra.mxu0 %v53
    %130 = vmatprep.subr.mxu0 0.0
    %131 = vmatpush2.msra.mxu0 %v52
    %132 = vmatprep.mubr.f32.mxu0 %v29
    %133 = vmatmul.mubr.f32.gmra.mxu0 %v28
    %v134 = vpop.f32.mrf.mxu0
    %v135 = vadd.f32 0.0, %v134
    %v136 = vpop.f32.mrf.mxu0
    %137 = vmatprep.mubr.f32.mxu0 %v31
    %138 = vmatmul.mubr.f32.gmra.mxu0 %v30
    %v139 = vpop.f32.mrf.mxu0
    %v140 = vadd.f32 0.0, %v139
    %v141 = vpop.f32.mrf.mxu0
    %142 = vmatprep.mubr.f32.mxu0 %v33
    %143 = vmatmul.mubr.f32.gmra.mxu0 %v32
    %v144 = vpop.f32.mrf.mxu0
    %v145 = vadd.f32 0.0, %v144
    %v146 = vpop.f32.mrf.mxu0
    %147 = vmatprep.mubr.f32.mxu0 %v35
    %148 = vmatmul.mubr.f32.gmra.mxu0 %v34
    %v149 = vpop.f32.mrf.mxu0
    %v150 = vadd.f32 0.0, %v149
    %v151 = vpop.f32.mrf.mxu0
    %152 = vdwg.mxu0
    %v153 = vadd.f32 %v24, %v135
    %v154 = vadd.f32 %v25, %v140
    %v155 = vadd.f32 %v26, %v145
    %v156 = vadd.f32 %v27, %v150
    %vm157 = vcmask 261120
    %158 = vst.msk [vmem:[#allocation2] sm:$0xff] %vm157, %v153
    %159 = vst.msk [vmem:[#allocation2 + $0x8] sm:$0xff] %vm157, %v154
    %160 = vst.msk [vmem:[#allocation2 + $0x10] sm:$0xff] %vm157, %v155
    %161 = vst.msk [vmem:[#allocation2 + $0x18] sm:$0xff] %vm157, %v156
    // Predicated region
    $region18: #{attention_forward.5} parent=1 // pred_check
      %p162 = pneg %p15
    $region19: #{attention_forward.5} parent=1 // pred_check_branch
      %164 = sbr.rel (%p162) target = $region21
    $region20: #{attention_forward.5} parent=1 // pred_region
      %v165 = vld [vmem:[#allocation2] sm:$0xff]
      %v166 = vld [vmem:[#allocation2 + $0x8] sm:$0xff]
      %v167 = vld [vmem:[#allocation2 + $0x10] sm:$0xff]
      %v168 = vld [vmem:[#allocation2 + $0x18] sm:$0xff]
      %v169 = vld [vmem:[%s2] sm:$0x1]
      %v171 = vlaneseq
      %v172 = vshrl.u32 %v171, 7
      %v173 = vsub.s32 0, %v172
      %v174 = vrot.slane %v169, %v173
      %v176 = vadd.f32 %v165, %v174
      %v177 = vadd.f32 %v166, %v174
      %v178 = vadd.f32 %v167, %v174
      %v179 = vadd.f32 %v168, %v174
      %180 = vst.msk [vmem:[#allocation3] sm:$0xff] %vm157, %v176
      %181 = vst.msk [vmem:[#allocation3 + $0x8] sm:$0xff] %vm157, %v177
      %182 = vst.msk [vmem:[#allocation3 + $0x10] sm:$0xff] %vm157, %v178
      %183 = vst.msk [vmem:[#allocation3 + $0x18] sm:$0xff] %vm157, %v179
    $region21: #{attention_forward.5} parent=1 // pred_fallthru
      _
    // Predicated region
    $region22: #{attention_forward.5} parent=1 // pred_check
      _
    $region23: #{attention_forward.5} parent=1 // pred_check_branch
      %185 = sbr.rel (0) target = $region25
    $region24: #{attention_forward.5} parent=1 // pred_region
      %s187 = ssub.s32 512, 512
      %188 = vsyncadd [#allocation4], %s187
      %s189 = sshll.u32 [#allocation3], 4
      %s190 = int_to_ptr.vmem [resolvable:$true] %s189
      %195 = dma.vmem_to_hbm [thread:$0]  %s190, 512, %s3, [#allocation4], 128, 128, 8
    $region25: #{attention_forward.5} parent=1 // pred_fallthru
      _
    // Predicated region
    $region26: #{attention_forward.5} parent=1 // pred_check
      _
    $region27: #{attention_forward.5} parent=1 // pred_check_branch
      %197 = sbr.rel (0) target = $region29
    $region28: #{attention_forward.5} parent=1 // pred_region
      %198 = dma.done [#allocation4], 512
    $region29: #{attention_forward.5} parent=1 // pred_fallthru
      _
    %199 = vsyncpa [#allocation4], 1

// kernel: attention_forward.4
$region0: #{attention_forward.4}
  #allocation0 [shape = 'u32[]', space=smem, size = 0x4, offset = 0x4, fixed_abs, tag = 'smem constant byte address 0x4 - core index']
  #allocation1 [shape = 'u32[144,128]{1,0:T(1,128)}', space=vmem, size = 0x12000, scoped, tag = 'internal scratch']
  #allocation2 [shape = 'f32[16,1]{1,0:T(8,128)}', space=vmem, size = 0x2000, scoped, tag = 'scratch operand']
  #allocation3 [shape = 'f32[16,1]{1,0:T(8,128)}', space=vmem, size = 0x2000, scoped, tag = 'scratch operand']
  #allocation4 [shape = 'f32[16,128]{1,0:T(8,128)}', space=vmem, size = 0x2000, scoped, tag = 'scratch operand']
  %s0 = inlined_call_operand.vmem [shape: f32[32,768], index: 0, kind: input, shape index: {}, may-alias: {0,1,2}]
  %s1 = inlined_call_operand.vmem [shape: f32[32,768], index: 1, kind: input, shape index: {}, may-alias: {0,1,2}]
  %s2 = inlined_call_operand.vmem [shape: f32[32,768], index: 2, kind: input, shape index: {}, may-alias: {0,1,2}]
  %s3 = inlined_call_operand.vmem [shape: f32[32,256], index: 3, kind: output, shape index: {}]
  %s4 = sld [smem:[#allocation0]]
  $region201: #{attention_forward.4} parent=0
    _
  %s6 = ssub.s32 1, %s4
  %s7 = scalar_select 0, %s6, %s4
  $region1: #{attention_forward.4} parent=0
    #allocation5 [shape = 'u8[16384]{0}', space=vmem, size = 0x4000, scoped, tag = 'input window, operand 0']
    #allocation6 [shape = 'u8[16384]{0}', space=vmem, size = 0x4000, scoped, tag = 'input window, operand 1']
    #allocation7 [shape = 'u8[16384]{0}', space=vmem, size = 0x4000, scoped, tag = 'input window, operand 2']
    #allocation8 [shape = 'u8[16384]{0}', space=vmem, size = 0x4000, scoped, tag = 'output window, operand 0']
    loop: start=0, step=1, limit=6
    $region2: #{attention_forward.4} parent=1 // loop_pre_header
      _
    $region3: #{attention_forward.4} parent=1 // loop_header
      %s9 = sphi 0, %s13
      %p10 = scmp.ge.s32.totalorder %s9, 6
      %s16 = sphi 0, %s42
      %s17 = sphi 0, %s38
      %s18 = sphi 0, %s34
      %s19 = sphi 0, %s30
      %s20 = sphi 0, %s16
      %s21 = sphi 0, %s17
      %s22 = sphi 0, %s18
      %s23 = sphi 0, %s19
      %s24 = sphi 0, %s20
      %s25 = sphi 0, %s21
      %s26 = sphi 0, %s22
      %s27 = sphi 0, %s23
      %s49 = sphi 0, %s51
      %s52 = sphi 0, %s49
      %s53 = sphi 0, %s52
      %s69 = sphi 0, %s53
      %s81 = sphi 0, %s83
      %s84 = sphi 0, %s81
      %s85 = sphi 0, %s84
      %s101 = sphi 0, %s85
      %s113 = sphi 0, %s115
      %s116 = sphi 0, %s113
      %s117 = sphi 0, %s116
      %s133 = sphi 0, %s117
      %s143 = sphi 0, %s145
      %s146 = sphi 0, %s143
      %s147 = sphi 0, %s146
      %s163 = sphi 0, %s147
    $region4: #{attention_forward.4} parent=1 // loop_header_branch
      %12 = sbr.rel (%p10) target = $region8
    $region5: #{attention_forward.4} parent=1 // loop_body
      %s14 = ssub.s32 %s9, 1
      %s15 = ssub.s32 %s9, 2
      %s28 = sadd.s32 1, %s19
      %p29 = scmp.ge.s32.totalorder %s28, 1
      %s30 = scalar_select %p29, 0, %s28
      %s31 = sadd.s32 1, %s18
      %s32 = scalar_select %p29, %s31, %s18
      %p33 = scmp.ge.s32.totalorder %s32, 1
      %s34 = scalar_select %p33, 0, %s32
      %s35 = sadd.s32 1, %s17
      %s36 = scalar_select %p33, %s35, %s17
      %p37 = scmp.ge.s32.totalorder %s36, 2
      %s38 = scalar_select %p37, 0, %s36
      %s39 = sadd.s32 1, %s16
      %s40 = scalar_select %p37, %s39, %s16
      %p41 = scmp.ge.s32.totalorder %s40, 2
      %s42 = scalar_select %p41, 0, %s40
      %s43 = sadd.s32 %s16, %s18
      %s44 = sadd.s32 %s42, %s34
      %s45 = ssub.s32 %s43, %s44
      %s46 = ssub.s32 %s17, %s38
      %s47 = sor.u32 %s45, %s46
      %p48 = scmp.eq.s32.totalorder %s47, 0
      %s50 = sadd.s32 %s49, 1
      %s51 = scalar_select %p48, %s49, %s50
      %p54 = pneg %p48
      %p55 = scmp.eq.s32.totalorder %s9, 3
      %p56 = por %p54, %p55
      %p57 = scmp.ne.s32.totalorder %s49, %s52
      %p58 = scmp.eq.s32.totalorder %s9, 0
      %p59 = por %p57, %p58
      %p60 = scmp.ne.s32.totalorder %s49, %s52
      %p61 = scmp.eq.s32.totalorder %s14, 3
      %p62 = por %p60, %p61
      %p63 = scmp.ne.s32.totalorder %s52, %s53
      %p64 = scmp.eq.s32.totalorder %s14, 0
      %p65 = por %p63, %p64
      %p66 = scmp.ne.s32.totalorder %s52, %s53
      %p67 = scmp.eq.s32.totalorder %s15, 3
      %p68 = por %p66, %p67
      %p70 = scmp.ne.s32.totalorder %s53, %s69
      %p71 = scmp.eq.s32.totalorder %s15, 0
      %p72 = por %p70, %p71
      %s73 = sadd.s32 %s16, %s19
      %s74 = sadd.s32 %s17, 2
      %s75 = sadd.s32 %s42, %s30
      %s76 = sadd.s32 %s38, 2
      %s77 = ssub.s32 %s73, %s75
      %s78 = ssub.s32 %s74, %s76
      %s79 = sor.u32 %s77, %s78
      %p80 = scmp.eq.s32.totalorder %s79, 0
      %s82 = sadd.s32 %s81, 1
      %s83 = scalar_select %p80, %s81, %s82
      %p86 = pneg %p80
      %p87 = scmp.eq.s32.totalorder %s9, 3
      %p88 = por %p86, %p87
      %p89 = scmp.ne.s32.totalorder %s81, %s84
      %p90 = scmp.eq.s32.totalorder %s9, 0
      %p91 = por %p89, %p90
      %p92 = scmp.ne.s32.totalorder %s81, %s84
      %p93 = scmp.eq.s32.totalorder %s14, 3
      %p94 = por %p92, %p93
      %p95 = scmp.ne.s32.totalorder %s84, %s85
      %p96 = scmp.eq.s32.totalorder %s14, 0
      %p97 = por %p95, %p96
      %p98 = scmp.ne.s32.totalorder %s84, %s85
      %p99 = scmp.eq.s32.totalorder %s15, 3
      %p100 = por %p98, %p99
      %p102 = scmp.ne.s32.totalorder %s85, %s101
      %p103 = scmp.eq.s32.totalorder %s15, 0
      %p104 = por %p102, %p103
      %s105 = sadd.s32 %s16, %s19
      %s106 = sadd.s32 %s17, 4
      %s107 = sadd.s32 %s42, %s30
      %s108 = sadd.s32 %s38, 4
      %s109 = ssub.s32 %s105, %s107
      %s110 = ssub.s32 %s106, %s108
      %s111 = sor.u32 %s109, %s110
      %p112 = scmp.eq.s32.totalorder %s111, 0
      %s114 = sadd.s32 %s113, 1
      %s115 = scalar_select %p112, %s113, %s114
      %p118 = pneg %p112
      %p119 = scmp.eq.s32.totalorder %s9, 3
      %p120 = por %p118, %p119
      %p121 = scmp.ne.s32.totalorder %s113, %s116
      %p122 = scmp.eq.s32.totalorder %s9, 0
      %p123 = por %p121, %p122
      %p124 = scmp.ne.s32.totalorder %s113, %s116
      %p125 = scmp.eq.s32.totalorder %s14, 3
      %p126 = por %p124, %p125
      %p127 = scmp.ne.s32.totalorder %s116, %s117
      %p128 = scmp.eq.s32.totalorder %s14, 0
      %p129 = por %p127, %p128
      %p130 = scmp.ne.s32.totalorder %s116, %s117
      %p131 = scmp.eq.s32.totalorder %s15, 3
      %p132 = por %p130, %p131
      %p134 = scmp.ne.s32.totalorder %s117, %s133
      %p135 = scmp.eq.s32.totalorder %s15, 0
      %p136 = por %p134, %p135
      %s137 = sadd.s32 %s16, %s18
      %s138 = sadd.s32 %s42, %s34
      %s139 = ssub.s32 %s137, %s138
      %s140 = ssub.s32 %s17, %s38
      %s141 = sor.u32 %s139, %s140
      %p142 = scmp.eq.s32.totalorder %s141, 0
      %s144 = sadd.s32 %s143, 1
      %s145 = scalar_select %p142, %s143, %s144
      %p148 = pneg %p142
      %p149 = scmp.eq.s32.totalorder %s9, 3
      %p150 = por %p148, %p149
      %p151 = scmp.ne.s32.totalorder %s143, %s146
      %p152 = scmp.eq.s32.totalorder %s9, 0
      %p153 = por %p151, %p152
      %p154 = scmp.ne.s32.totalorder %s143, %s146
      %p155 = scmp.eq.s32.totalorder %s14, 3
      %p156 = por %p154, %p155
      %p157 = scmp.ne.s32.totalorder %s146, %s147
      %p158 = scmp.eq.s32.totalorder %s14, 0
      %p159 = por %p157, %p158
      %p160 = scmp.ne.s32.totalorder %s146, %s147
      %p161 = scmp.eq.s32.totalorder %s15, 3
      %p162 = por %p160, %p161
      %p164 = scmp.ne.s32.totalorder %s147, %s163
      %p165 = scmp.eq.s32.totalorder %s15, 0
      %p166 = por %p164, %p165
      %p167 = scmp.le.s32.totalorder 1, %s9
      %p168 = scmp.lt.s32.totalorder %s9, 5
      %p169 = pnand %p167, %p168
      %p170 = pneg %p169
      // Predicated region
      $region9: #{attention_forward.4} parent=5 // pred_check
        _
      $region10: #{attention_forward.4} parent=5 // pred_check_branch
        %172 = sbr.rel (%p169) target = $region12
      $region11: #{attention_forward.4} parent=5 // pred_region
        %s173 = ssub.s32 %s9, 1
      $region12: #{attention_forward.4} parent=5 // pred_fallthru
        _
      %p174 = scmp.lt.s32.totalorder %s9, 4
      // Predicated region
      $region13: #{attention_forward.4} parent=5 // pred_check
        %p175 = pneg %p174
      $region14: #{attention_forward.4} parent=5 // pred_check_branch
        %177 = sbr.rel (%p175) target = $region16
      $region15: #{attention_forward.4} parent=5 // pred_region
        // Predicated region
        $region17: #{attention_forward.4} parent=15 // pred_check
          %p178 = pneg %p59
        $region18: #{attention_forward.4} parent=15 // pred_check_branch
          %180 = sbr.rel (%p178) target = $region20
        $region19: #{attention_forward.4} parent=15 // pred_region
          %s181 = sand.u32 %s49, 1
          %s182 = sand.u32 %s49, 1
          %s183 = smul.addr %s182, 16
          %s184 = scalar_lea.vmem [#allocation5], %s183
          %s185 = sadd.s32 %s16, %s18
          %s186 = smul.u32 2, %s185
          %s187 = smul.addr %s186, 6
          %s188 = sadd.s32 %s17, %s187
          %s189 = smul.addr %s188, 8
          %s190 = scalar_lea.vmem %s0, %s189
          // Predicated region
          $region21: #{attention_forward.4} parent=19 // pred_check
            _
          $region22: #{attention_forward.4} parent=19 // pred_check_branch
            %192 = sbr.rel (0) target = $region24
          $region23: #{attention_forward.4} parent=19 // pred_region
            // Predicated region
            $region25: #{attention_forward.4} parent=23 // pred_check
              _
            $region26: #{attention_forward.4} parent=23 // pred_check_branch
              %194 = sbr.rel (0) target = $region28
            $region27: #{attention_forward.4} parent=23 // pred_region
              // Predicated region
              $region40: #{attention_forward.4} parent=27 // pred_check
                _
              $region41: #{attention_forward.4} parent=27 // pred_check_branch
                %212 = sbr.rel (0) target = $region43
              $region42: #{attention_forward.4} parent=27 // pred_region
                loop: start=0, step=1, limit=1
                $region44: #{attention_forward.4} parent=42 // loop_pre_header
                  _
                $region45: #{attention_forward.4} parent=42 // loop_header
                  %s214 = sphi 0, %s218
                  %p215 = scmp.ge.s32.totalorder %s214, 1
                  %s219 = sphi %s190, %s190
                  %s220 = sphi %s184, %s184
                $region46: #{attention_forward.4} parent=42 // loop_header_branch
                  %217 = sbr.rel (%p215) target = $region50
                $region47: #{attention_forward.4} parent=42 // loop_body
                  %v221 = vld [vmem:[%s219] sm:$0xff]
                  %222 = vst [vmem:[%s220] sm:$0xff] %v221
                  %v223 = vld [vmem:[%s219 + $0x30] sm:$0xff]
                  %224 = vst [vmem:[%s220 + $0x8] sm:$0xff] %v223
                $region48: #{attention_forward.4} parent=42 // loop_footer
                  %s218 = sadd.s32 1, %s214
                $region49: #{attention_forward.4} parent=42 // loop_footer_branch
                  %213 = sbr.rel target = $region45
                $region50: #{attention_forward.4} parent=42 // loop_exit
                  _
              $region43: #{attention_forward.4} parent=27 // pred_fallthru
                _
              // Predicated region
              $region51: #{attention_forward.4} parent=27 // pred_check
                _
              $region52: #{attention_forward.4} parent=27 // pred_check_branch
                %226 = sbr.rel target = $region54
              $region53: #{attention_forward.4} parent=27 // pred_region
                _
              $region54: #{attention_forward.4} parent=27 // pred_fallthru
                _
            $region28: #{attention_forward.4} parent=23 // pred_fallthru
              _
            // Predicated region
            $region29: #{attention_forward.4} parent=23 // pred_check
              _
            $region30: #{attention_forward.4} parent=23 // pred_check_branch
              %196 = sbr.rel target = $region32
            $region31: #{attention_forward.4} parent=23 // pred_region
              %s198 = ssub.s32 256, 1
              loop: start=0, step=1, limit=1
              $region33: #{attention_forward.4} parent=31 // loop_pre_header
                _
              $region34: #{attention_forward.4} parent=31 // loop_header
                %s200 = sphi 0, %s204
                %p201 = scmp.ge.s32.totalorder %s200, 1
                %s205 = sphi %s190, %s190
                %s206 = sphi %s184, %s184
              $region35: #{attention_forward.4} parent=31 // loop_header_branch
                %203 = sbr.rel (%p201) target = $region39
              $region36: #{attention_forward.4} parent=31 // loop_body
                %v207 = vld [vmem:[%s205] sm:%s198]
                %208 = vst [vmem:[%s206] sm:%s198] %v207
                %v209 = vld [vmem:[%s205 + $0x30] sm:%s198]
                %210 = vst [vmem:[%s206 + $0x8] sm:%s198] %v209
              $region37: #{attention_forward.4} parent=31 // loop_footer
                %s204 = sadd.s32 1, %s200
              $region38: #{attention_forward.4} parent=31 // loop_footer_branch
                %199 = sbr.rel target = $region34
              $region39: #{attention_forward.4} parent=31 // loop_exit
                _
            $region32: #{attention_forward.4} parent=23 // pred_fallthru
              _
          $region24: #{attention_forward.4} parent=19 // pred_fallthru
            _
          %227 = vnop
        $region20: #{attention_forward.4} parent=15 // pred_fallthru
          _
        // Predicated region
        $region55: #{attention_forward.4} parent=15 // pred_check
          %p228 = pneg %p91
        $region56: #{attention_forward.4} parent=15 // pred_check_branch
          %230 = sbr.rel (%p228) target = $region58
        $region57: #{attention_forward.4} parent=15 // pred_region
          %s231 = sand.u32 %s81, 1
          %s232 = sand.u32 %s81, 1
          %s233 = smul.addr %s232, 16
          %s234 = scalar_lea.vmem [#allocation6], %s233
          %s235 = sadd.s32 %s16, %s19
          %s236 = sadd.s32 %s17, 2
          %s237 = smul.u32 2, %s235
          %s238 = smul.addr %s237, 6
          %s239 = sadd.s32 %s236, %s238
          %s240 = smul.addr %s239, 8
          %s241 = scalar_lea.vmem %s1, %s240
          // Predicated region
          $region59: #{attention_forward.4} parent=57 // pred_check
            _
          $region60: #{attention_forward.4} parent=57 // pred_check_branch
            %243 = sbr.rel (0) target = $region62
          $region61: #{attention_forward.4} parent=57 // pred_region
            // Predicated region
            $region63: #{attention_forward.4} parent=61 // pred_check
              _
            $region64: #{attention_forward.4} parent=61 // pred_check_branch
              %245 = sbr.rel (0) target = $region66
            $region65: #{attention_forward.4} parent=61 // pred_region
              // Predicated region
              $region78: #{attention_forward.4} parent=65 // pred_check
                _
              $region79: #{attention_forward.4} parent=65 // pred_check_branch
                %263 = sbr.rel (0) target = $region81
              $region80: #{attention_forward.4} parent=65 // pred_region
                loop: start=0, step=1, limit=1
                $region82: #{attention_forward.4} parent=80 // loop_pre_header
                  _
                $region83: #{attention_forward.4} parent=80 // loop_header
                  %s265 = sphi 0, %s269
                  %p266 = scmp.ge.s32.totalorder %s265, 1
                  %s270 = sphi %s241, %s241
                  %s271 = sphi %s234, %s234
                $region84: #{attention_forward.4} parent=80 // loop_header_branch
                  %268 = sbr.rel (%p266) target = $region88
                $region85: #{attention_forward.4} parent=80 // loop_body
                  %v272 = vld [vmem:[%s270] sm:$0xff]
                  %273 = vst [vmem:[%s271] sm:$0xff] %v272
                  %v274 = vld [vmem:[%s270 + $0x30] sm:$0xff]
                  %275 = vst [vmem:[%s271 + $0x8] sm:$0xff] %v274
                $region86: #{attention_forward.4} parent=80 // loop_footer
                  %s269 = sadd.s32 1, %s265
                $region87: #{attention_forward.4} parent=80 // loop_footer_branch
                  %264 = sbr.rel target = $region83
                $region88: #{attention_forward.4} parent=80 // loop_exit
                  _
              $region81: #{attention_forward.4} parent=65 // pred_fallthru
                _
              // Predicated region
              $region89: #{attention_forward.4} parent=65 // pred_check
                _
              $region90: #{attention_forward.4} parent=65 // pred_check_branch
                %277 = sbr.rel target = $region92
              $region91: #{attention_forward.4} parent=65 // pred_region
                _
              $region92: #{attention_forward.4} parent=65 // pred_fallthru
                _
            $region66: #{attention_forward.4} parent=61 // pred_fallthru
              _
            // Predicated region
            $region67: #{attention_forward.4} parent=61 // pred_check
              _
            $region68: #{attention_forward.4} parent=61 // pred_check_branch
              %247 = sbr.rel target = $region70
            $region69: #{attention_forward.4} parent=61 // pred_region
              %s249 = ssub.s32 256, 1
              loop: start=0, step=1, limit=1
              $region71: #{attention_forward.4} parent=69 // loop_pre_header
                _
              $region72: #{attention_forward.4} parent=69 // loop_header
                %s251 = sphi 0, %s255
                %p252 = scmp.ge.s32.totalorder %s251, 1
                %s256 = sphi %s241, %s241
                %s257 = sphi %s234, %s234
              $region73: #{attention_forward.4} parent=69 // loop_header_branch
                %254 = sbr.rel (%p252) target = $region77
              $region74: #{attention_forward.4} parent=69 // loop_body
                %v258 = vld [vmem:[%s256] sm:%s249]
                %259 = vst [vmem:[%s257] sm:%s249] %v258
                %v260 = vld [vmem:[%s256 + $0x30] sm:%s249]
                %261 = vst [vmem:[%s257 + $0x8] sm:%s249] %v260
              $region75: #{attention_forward.4} parent=69 // loop_footer
                %s255 = sadd.s32 1, %s251
              $region76: #{attention_forward.4} parent=69 // loop_footer_branch
                %250 = sbr.rel target = $region72
              $region77: #{attention_forward.4} parent=69 // loop_exit
                _
            $region70: #{attention_forward.4} parent=61 // pred_fallthru
              _
          $region62: #{attention_forward.4} parent=57 // pred_fallthru
            _
          %278 = vnop
        $region58: #{attention_forward.4} parent=15 // pred_fallthru
          _
        // Predicated region
        $region93: #{attention_forward.4} parent=15 // pred_check
          %p279 = pneg %p123
        $region94: #{attention_forward.4} parent=15 // pred_check_branch
          %281 = sbr.rel (%p279) target = $region96
        $region95: #{attention_forward.4} parent=15 // pred_region
          %s282 = sand.u32 %s113, 1
          %s283 = sand.u32 %s113, 1
          %s284 = smul.addr %s283, 16
          %s285 = scalar_lea.vmem [#allocation7], %s284
          %s286 = sadd.s32 %s16, %s19
          %s287 = sadd.s32 %s17, 4
          %s288 = smul.u32 2, %s286
          %s289 = smul.addr %s288, 6
          %s290 = sadd.s32 %s287, %s289
          %s291 = smul.addr %s290, 8
          %s292 = scalar_lea.vmem %s2, %s291
          // Predicated region
          $region97: #{attention_forward.4} parent=95 // pred_check
            _
          $region98: #{attention_forward.4} parent=95 // pred_check_branch
            %294 = sbr.rel (0) target = $region100
          $region99: #{attention_forward.4} parent=95 // pred_region
            // Predicated region
            $region101: #{attention_forward.4} parent=99 // pred_check
              _
            $region102: #{attention_forward.4} parent=99 // pred_check_branch
              %296 = sbr.rel (0) target = $region104
            $region103: #{attention_forward.4} parent=99 // pred_region
              // Predicated region
              $region116: #{attention_forward.4} parent=103 // pred_check
                _
              $region117: #{attention_forward.4} parent=103 // pred_check_branch
                %314 = sbr.rel (0) target = $region119
              $region118: #{attention_forward.4} parent=103 // pred_region
                loop: start=0, step=1, limit=1
                $region120: #{attention_forward.4} parent=118 // loop_pre_header
                  _
                $region121: #{attention_forward.4} parent=118 // loop_header
                  %s316 = sphi 0, %s320
                  %p317 = scmp.ge.s32.totalorder %s316, 1
                  %s321 = sphi %s292, %s292
                  %s322 = sphi %s285, %s285
                $region122: #{attention_forward.4} parent=118 // loop_header_branch
                  %319 = sbr.rel (%p317) target = $region126
                $region123: #{attention_forward.4} parent=118 // loop_body
                  %v323 = vld [vmem:[%s321] sm:$0xff]
                  %324 = vst [vmem:[%s322] sm:$0xff] %v323
                  %v325 = vld [vmem:[%s321 + $0x30] sm:$0xff]
                  %326 = vst [vmem:[%s322 + $0x8] sm:$0xff] %v325
                $region124: #{attention_forward.4} parent=118 // loop_footer
                  %s320 = sadd.s32 1, %s316
                $region125: #{attention_forward.4} parent=118 // loop_footer_branch
                  %315 = sbr.rel target = $region121
                $region126: #{attention_forward.4} parent=118 // loop_exit
                  _
              $region119: #{attention_forward.4} parent=103 // pred_fallthru
                _
              // Predicated region
              $region127: #{attention_forward.4} parent=103 // pred_check
                _
              $region128: #{attention_forward.4} parent=103 // pred_check_branch
                %328 = sbr.rel target = $region130
              $region129: #{attention_forward.4} parent=103 // pred_region
                _
              $region130: #{attention_forward.4} parent=103 // pred_fallthru
                _
            $region104: #{attention_forward.4} parent=99 // pred_fallthru
              _
            // Predicated region
            $region105: #{attention_forward.4} parent=99 // pred_check
              _
            $region106: #{attention_forward.4} parent=99 // pred_check_branch
              %298 = sbr.rel target = $region108
            $region107: #{attention_forward.4} parent=99 // pred_region
              %s300 = ssub.s32 256, 1
              loop: start=0, step=1, limit=1
              $region109: #{attention_forward.4} parent=107 // loop_pre_header
                _
              $region110: #{attention_forward.4} parent=107 // loop_header
                %s302 = sphi 0, %s306
                %p303 = scmp.ge.s32.totalorder %s302, 1
                %s307 = sphi %s292, %s292
                %s308 = sphi %s285, %s285
              $region111: #{attention_forward.4} parent=107 // loop_header_branch
                %305 = sbr.rel (%p303) target = $region115
              $region112: #{attention_forward.4} parent=107 // loop_body
                %v309 = vld [vmem:[%s307] sm:%s300]
                %310 = vst [vmem:[%s308] sm:%s300] %v309
                %v311 = vld [vmem:[%s307 + $0x30] sm:%s300]
                %312 = vst [vmem:[%s308 + $0x8] sm:%s300] %v311
              $region113: #{attention_forward.4} parent=107 // loop_footer
                %s306 = sadd.s32 1, %s302
              $region114: #{attention_forward.4} parent=107 // loop_footer_branch
                %301 = sbr.rel target = $region110
              $region115: #{attention_forward.4} parent=107 // loop_exit
                _
            $region108: #{attention_forward.4} parent=99 // pred_fallthru
              _
          $region100: #{attention_forward.4} parent=95 // pred_fallthru
            _
          %329 = vnop
        $region96: #{attention_forward.4} parent=15 // pred_fallthru
          _
      $region16: #{attention_forward.4} parent=5 // pred_fallthru
        _
      %p330 = scmp.le.s32.totalorder 1, %s9
      %p331 = scmp.lt.s32.totalorder %s9, 5
      %p332 = pnand %p330, %p331
      %p333 = pneg %p332
      // Predicated region
      $region131: #{attention_forward.4} parent=5 // pred_check
        _
      $region132: #{attention_forward.4} parent=5 // pred_check_branch
        %335 = sbr.rel (%p332) target = $region134
      $region133: #{attention_forward.4} parent=5 // pred_region
        %s336 = ssub.s32 %s9, 1
        %s337 = sand.u32 %s52, 1
        %s338 = sand.u32 %s52, 1
        %s339 = smul.addr %s338, 16
        %s340 = scalar_lea.vmem [#allocation5], %s339
        // Predicated region
        $region135: #{attention_forward.4} parent=133 // pred_check
          %p341 = pneg %p65
        $region136: #{attention_forward.4} parent=133 // pred_check_branch
          %343 = sbr.rel (%p341) target = $region138
        $region137: #{attention_forward.4} parent=133 // pred_region
          _
        $region138: #{attention_forward.4} parent=133 // pred_fallthru
          _
        %s344 = sand.u32 %s84, 1
        %s345 = sand.u32 %s84, 1
        %s346 = smul.addr %s345, 16
        %s347 = scalar_lea.vmem [#allocation6], %s346
        // Predicated region
        $region139: #{attention_forward.4} parent=133 // pred_check
          %p348 = pneg %p97
        $region140: #{attention_forward.4} parent=133 // pred_check_branch
          %350 = sbr.rel (%p348) target = $region142
        $region141: #{attention_forward.4} parent=133 // pred_region
          _
        $region142: #{attention_forward.4} parent=133 // pred_fallthru
          _
        %s351 = sand.u32 %s116, 1
        %s352 = sand.u32 %s116, 1
        %s353 = smul.addr %s352, 16
        %s354 = scalar_lea.vmem [#allocation7], %s353
        // Predicated region
        $region143: #{attention_forward.4} parent=133 // pred_check
          %p355 = pneg %p129
        $region144: #{attention_forward.4} parent=133 // pred_check_branch
          %357 = sbr.rel (%p355) target = $region146
        $region145: #{attention_forward.4} parent=133 // pred_region
          _
        $region146: #{attention_forward.4} parent=133 // pred_fallthru
          _
        %s358 = sand.u32 %s52, 1
        %s359 = sand.u32 %s52, 1
        %s360 = smul.addr %s359, 16
        %s361 = scalar_lea.vmem [#allocation5], %s360
        %p362 = pneg %p65
        %p363 = pneg %p62
        %s364 = sand.u32 %s84, 1
        %s365 = sand.u32 %s84, 1
        %s366 = smul.addr %s365, 16
        %s367 = scalar_lea.vmem [#allocation6], %s366
        %p368 = pneg %p97
        %p369 = pneg %p94
        %s370 = sand.u32 %s116, 1
        %s371 = sand.u32 %s116, 1
        %s372 = smul.addr %s371, 16
        %s373 = scalar_lea.vmem [#allocation7], %s372
        %p374 = pneg %p129
        %p375 = pneg %p126
        %p376 = pneg %p159
        %p377 = pneg %p156
        %s378 = sand.u32 %s146, 1
        %s379 = sand.u32 %s146, 1
        %s380 = smul.addr %s379, 16
        %s381 = scalar_lea.vmem [#allocation8], %s380
        %s382 = sadd.s32 %s20, %s22
        %s383 = smul.u32 2, %s382
        %s384 = sadd.s32 %s20, %s23
        %s385 = sadd.s32 %s21, 2
        %s386 = smul.u32 2, %s384
        %s387 = sadd.s32 %s20, %s23
        %s388 = sadd.s32 %s21, 4
        %s389 = smul.u32 2, %s387
        %s390 = sadd.s32 %s20, %s22
        %s391 = smul.u32 2, %s390
        %p392 = scmp.eq.s32.totalorder %s23, 0
        // Predicated region
        $region147: #{attention_forward.4} parent=133 // pred_check
          %p393 = pneg %p392
        $region148: #{attention_forward.4} parent=133 // pred_check_branch
          %395 = sbr.rel (%p393) target = $region150
        $region149: #{attention_forward.4} parent=133 // pred_region
          %vm396 = vcmask 7168
          %397 = vst.msk [vmem:[#allocation2] sm:$0xff] %vm396, -inf
          %398 = vst.msk [vmem:[#allocation2 + $0x8] sm:$0xff] %vm396, -inf
          %399 = vst.msk [vmem:[#allocation3] sm:$0xff] %vm396, 0.0
          %400 = vst.msk [vmem:[#allocation3 + $0x8] sm:$0xff] %vm396, 0.0
          %401 = vst [vmem:[#allocation4] sm:$0xff] 0.0
          %402 = vst [vmem:[#allocation4 + $0x8] sm:$0xff] 0.0
        $region150: #{attention_forward.4} parent=133 // pred_fallthru
          _
        %v403 = vld [vmem:[%s340] sm:$0xff]
        %v404 = vld [vmem:[%s340 + $0x8] sm:$0xff]
        %v405 = vmul.f32 %v403, 0.088388346
        %v406 = vmul.f32 %v404, 0.088388346
        %v407 = vld [vmem:[%s347] sm:$0xff]
        %v408 = vld [vmem:[%s347 + $0x8] sm:$0xff]
        %409 = vmatprep.subr.mxu0 0.0
        %410 = vmatpush1.xpose.msra.mxu0 0.0
        %411 = vmatprep.subr.mxu0 0.0
        %412 = vmatpush1.xpose.msra.mxu0 0.0
        %413 = vmatprep.subr.mxu0 0.0
        %414 = vmatpush1.xpose.msra.mxu0 0.0
        %415 = vmatprep.subr.mxu0 0.0
        %416 = vmatpush1.xpose.msra.mxu0 0.0
        %417 = vmatprep.subr.mxu0 0.0
        %418 = vmatpush1.xpose.msra.mxu0 0.0
        %419 = vmatprep.subr.mxu0 0.0
        %420 = vmatpush1.xpose.msra.mxu0 0.0
        %421 = vmatprep.subr.mxu0 0.0
        %422 = vmatpush1.xpose.msra.mxu0 0.0
        %423 = vmatprep.subr.mxu0 0.0
        %424 = vmatpush1.xpose.msra.mxu0 0.0
        %425 = vmatprep.subr.mxu0 0.0
        %426 = vmatpush1.xpose.msra.mxu0 0.0
        %427 = vmatprep.subr.mxu0 0.0
        %428 = vmatpush1.xpose.msra.mxu0 0.0
        %429 = vmatprep.subr.mxu0 0.0
        %430 = vmatpush1.xpose.msra.mxu0 0.0
        %431 = vmatprep.subr.mxu0 0.0
        %432 = vmatpush1.xpose.msra.mxu0 0.0
        %433 = vmatprep.subr.mxu0 0.0
        %434 = vmatpush1.xpose.msra.mxu0 0.0
        %435 = vmatprep.subr.mxu0 0.0
        %436 = vmatpush1.xpose.msra.mxu0 0.0
        %437 = vmatprep.subr.mxu0 0.0
        %438 = vmatpush1.xpose.msra.mxu0 %v408
        %439 = vmatprep.subr.mxu0 0.0
        %440 = vmatpush1.xpose.msra.mxu0 %v407
        %441 = vmatprep.subr.mxu0 0.0
        %442 = vmatpush2.xpose.msra.mxu0 0.0
        %443 = vmatprep.subr.mxu0 0.0
        %444 = vmatpush2.xpose.msra.mxu0 0.0
        %445 = vmatprep.subr.mxu0 0.0
        %446 = vmatpush2.xpose.msra.mxu0 0.0
        %447 = vmatprep.subr.mxu0 0.0
        %448 = vmatpush2.xpose.msra.mxu0 0.0
        %449 = vmatprep.subr.mxu0 0.0
        %450 = vmatpush2.xpose.msra.mxu0 0.0
        %451 = vmatprep.subr.mxu0 0.0
        %452 = vmatpush2.xpose.msra.mxu0 0.0
        %453 = vmatprep.subr.mxu0 0.0
        %454 = vmatpush2.xpose.msra.mxu0 0.0
        %455 = vmatprep.subr.mxu0 0.0
        %456 = vmatpush2.xpose.msra.mxu0 0.0
        %457 = vmatprep.subr.mxu0 0.0
        %458 = vmatpush2.xpose.msra.mxu0 0.0
        %459 = vmatprep.subr.mxu0 0.0
        %460 = vmatpush2.xpose.msra.mxu0 0.0
        %461 = vmatprep.subr.mxu0 0.0
        %462 = vmatpush2.xpose.msra.mxu0 0.0
        %463 = vmatprep.subr.mxu0 0.0
        %464 = vmatpush2.xpose.msra.mxu0 0.0
        %465 = vmatprep.subr.mxu0 0.0
        %466 = vmatpush2.xpose.msra.mxu0 0.0
        %467 = vmatprep.subr.mxu0 0.0
        %468 = vmatpush2.xpose.msra.mxu0 0.0
        %469 = vmatprep.subr.mxu0 0.0
        %470 = vmatpush2.xpose.msra.mxu0 0.0
        %471 = vmatprep.subr.mxu0 0.0
        %472 = vmatpush2.xpose.msra.mxu0 0.0
        %473 = vmatprep.mubr.f32.mxu0 0.0
        %474 = vmatmul.mubr.f32.gmra.mxu0 %v405
        %v475 = vpop.f32.mrf.mxu0
        %v476 = vadd.f32 0.0, %v475
        %v477 = vpop.f32.mrf.mxu0
        %478 = vmatprep.mubr.f32.mxu0 0.0
        %479 = vmatmul.mubr.f32.gmra.mxu0 %v406
        %v480 = vpop.f32.mrf.mxu0
        %v481 = vadd.f32 0.0, %v480
        %v482 = vpop.f32.mrf.mxu0
        %483 = vdwg.mxu0
        %v484 = vld [vmem:[#allocation2] sm:$0xff]
        %v485 = vld [vmem:[#allocation2 + $0x8] sm:$0xff]
        %vm486 = vcmask 130048
        %v487 = vsel %vm486, %v476, -inf
        %488 = vmax.xlane.f32.xlu0 %v487
        %v489 = vpop.xlane.xlu0 %488
        %v490 = vsel %vm486, %v481, -inf
        %491 = vmax.xlane.f32.xlu0 %v490
        %v492 = vpop.xlane.xlu0 %491
        %v493 = vmax.f32 %v484, %v489
        %v494 = vmax.f32 %v485, %v492
        %v495 = vsub.f32 %v484, %v493
        %v496 = vsub.f32 %v485, %v494
        %v497 = vmul.f32 %v495, 1.442695
        %v498 = vpow.pop %v497
        %v499 = vmul.f32 %v496, 1.442695
        %v500 = vpow.pop %v499
        %502 = vset.pattern.permute.xlu0 0
        %503 = vperm.xlu0 %502, %v493
        %v504 = vpop.permute.xlu0 %503
        %507 = vset.pattern.permute.xlu0 0
        %508 = vperm.xlu0 %507, %v494
        %v509 = vpop.permute.xlu0 %508
        %v511 = vsub.f32 %v476, %v504
        %v512 = vsub.f32 %v481, %v509
        %v513 = vmul.f32 %v511, 1.442695
        %v514 = vpow.pop %v513
        %v515 = vmul.f32 %v512, 1.442695
        %v516 = vpow.pop %v515
        %v517 = vld [vmem:[#allocation3] sm:$0xff]
        %v518 = vld [vmem:[#allocation3 + $0x8] sm:$0xff]
        %v519 = vmul.f32 %v498, %v517
        %v520 = vmul.f32 %v500, %v518
        %v521 = vsel %vm486, %v514, 0.0
        %522 = vadd.xlane.f32.xlu0 %v521
        %v523 = vpop.xlane.xlu0 %522
        %v524 = vsel %vm486, %v516, 0.0
        %525 = vadd.xlane.f32.xlu0 %v524
        %v526 = vpop.xlane.xlu0 %525
        %v527 = vadd.f32 %v519, %v523
        %v528 = vadd.f32 %v520, %v526
        %vm529 = vcmask 7168
        %530 = vst.msk [vmem:[#allocation3] sm:$0xff] %vm529, %v527
        %531 = vst.msk [vmem:[#allocation3 + $0x8] sm:$0xff] %vm529, %v528
        %v532 = vld [vmem:[#allocation4] sm:$0xff]
        %v533 = vld [vmem:[#allocation4 + $0x8] sm:$0xff]
        %535 = vset.pattern.permute.xlu0 0
        %536 = vperm.xlu0 %535, %v498
        %v537 = vpop.permute.xlu0 %536
        %540 = vset.pattern.permute.xlu0 0
        %541 = vperm.xlu0 %540, %v500
        %v542 = vpop.permute.xlu0 %541
        %v544 = vmul.f32 %v537, %v532
        %v545 = vmul.f32 %v542, %v533
        %v546 = vld [vmem:[%s354] sm:$0xff]
        %v547 = vld [vmem:[%s354 + $0x8] sm:$0xff]
        %v549 = vsel %vm486, %v514, 0
        %v552 = vsel %vm486, %v516, 0
        %554 = vmatprep.subr.mxu0 0.0
        %555 = vmatpush1.msra.mxu0 0.0
        %556 = vmatprep.subr.mxu0 0.0
        %557 = vmatpush1.msra.mxu0 0.0
        %558 = vmatprep.subr.mxu0 0.0
        %559 = vmatpush1.msra.mxu0 0.0
        %560 = vmatprep.subr.mxu0 0.0
        %561 = vmatpush1.msra.mxu0 0.0
        %562 = vmatprep.subr.mxu0 0.0
        %563 = vmatpush1.msra.mxu0 0.0
        %564 = vmatprep.subr.mxu0 0.0
        %565 = vmatpush1.msra.mxu0 0.0
        %566 = vmatprep.subr.mxu0 0.0
        %567 = vmatpush1.msra.mxu0 0.0
        %568 = vmatprep.subr.mxu0 0.0
        %569 = vmatpush1.msra.mxu0 0.0
        %570 = vmatprep.subr.mxu0 0.0
        %571 = vmatpush1.msra.mxu0 0.0
        %572 = vmatprep.subr.mxu0 0.0
        %573 = vmatpush1.msra.mxu0 0.0
        %574 = vmatprep.subr.mxu0 0.0
        %575 = vmatpush1.msra.mxu0 0.0
        %576 = vmatprep.subr.mxu0 0.0
        %577 = vmatpush1.msra.mxu0 0.0
        %578 = vmatprep.subr.mxu0 0.0
        %579 = vmatpush1.msra.mxu0 0.0
        %580 = vmatprep.subr.mxu0 0.0
        %581 = vmatpush1.msra.mxu0 0.0
        %582 = vmatprep.subr.mxu0 0.0
        %583 = vmatpush1.msra.mxu0 %v547
        %584 = vmatprep.subr.mxu0 0.0
        %585 = vmatpush1.msra.mxu0 %v546
        %586 = vmatprep.subr.mxu0 0.0
        %587 = vmatpush2.msra.mxu0 0.0
        %588 = vmatprep.subr.mxu0 0.0
        %589 = vmatpush2.msra.mxu0 0.0
        %590 = vmatprep.subr.mxu0 0.0
        %591 = vmatpush2.msra.mxu0 0.0
        %592 = vmatprep.subr.mxu0 0.0
        %593 = vmatpush2.msra.mxu0 0.0
        %594 = vmatprep.subr.mxu0 0.0
        %595 = vmatpush2.msra.mxu0 0.0
        %596 = vmatprep.subr.mxu0 0.0
        %597 = vmatpush2.msra.mxu0 0.0
        %598 = vmatprep.subr.mxu0 0.0
        %599 = vmatpush2.msra.mxu0 0.0
        %600 = vmatprep.subr.mxu0 0.0
        %601 = vmatpush2.msra.mxu0 0.0
        %602 = vmatprep.subr.mxu0 0.0
        %603 = vmatpush2.msra.mxu0 0.0
        %604 = vmatprep.subr.mxu0 0.0
        %605 = vmatpush2.msra.mxu0 0.0
        %606 = vmatprep.subr.mxu0 0.0
        %607 = vmatpush2.msra.mxu0 0.0
        %608 = vmatprep.subr.mxu0 0.0
        %609 = vmatpush2.msra.mxu0 0.0
        %610 = vmatprep.subr.mxu0 0.0
        %611 = vmatpush2.msra.mxu0 0.0
        %612 = vmatprep.subr.mxu0 0.0
        %613 = vmatpush2.msra.mxu0 0.0
        %614 = vmatprep.subr.mxu0 0.0
        %615 = vmatpush2.msra.mxu0 0.0
        %616 = vmatprep.subr.mxu0 0.0
        %617 = vmatpush2.msra.mxu0 0.0
        %618 = vmatprep.mubr.f32.mxu0 0.0
        %619 = vmatmul.mubr.f32.gmra.mxu0 %v549
        %v620 = vpop.f32.mrf.mxu0
        %v621 = vadd.f32 0.0, %v620
        %v622 = vpop.f32.mrf.mxu0
        %623 = vmatprep.mubr.f32.mxu0 0.0
        %624 = vmatmul.mubr.f32.gmra.mxu0 %v552
        %v625 = vpop.f32.mrf.mxu0
        %v626 = vadd.f32 0.0, %v625
        %v627 = vpop.f32.mrf.mxu0
        %628 = vdwg.mxu0
        %v629 = vadd.f32 %v544, %v621
        %v630 = vadd.f32 %v545, %v626
        %631 = vst [vmem:[#allocation4] sm:$0xff] %v629
        %632 = vst [vmem:[#allocation4 + $0x8] sm:$0xff] %v630
        %633 = vst.msk [vmem:[#allocation2] sm:$0xff] %vm529, %v493
        %634 = vst.msk [vmem:[#allocation2 + $0x8] sm:$0xff] %vm529, %v494
        // Predicated region
        $region151: #{attention_forward.4} parent=133 // pred_check
          %p635 = pneg %p392
        $region152: #{attention_forward.4} parent=133 // pred_check_branch
          %637 = sbr.rel (%p635) target = $region154
        $region153: #{attention_forward.4} parent=133 // pred_region
          %v638 = vld [vmem:[#allocation3] sm:$0xff]
          %v639 = vld [vmem:[#allocation3 + $0x8] sm:$0xff]
          %v640 = vrcp.pop %v638
          %v641 = vrcp.pop %v639
          %v642 = vld [vmem:[#allocation4] sm:$0xff]
          %v643 = vld [vmem:[#allocation4 + $0x8] sm:$0xff]
          %645 = vset.pattern.permute.xlu0 0
          %646 = vperm.xlu0 %645, %v640
          %v647 = vpop.permute.xlu0 %646
          %650 = vset.pattern.permute.xlu0 0
          %651 = vperm.xlu0 %650, %v641
          %v652 = vpop.permute.xlu0 %651
          %v654 = vmul.f32 %v642, %v647
          %v655 = vmul.f32 %v643, %v652
          %656 = vst [vmem:[%s381] sm:$0xff] %v654
          %657 = vst [vmem:[%s381 + $0x8] sm:$0xff] %v655
        $region154: #{attention_forward.4} parent=133 // pred_fallthru
          _
        %s658 = sand.u32 %s146, 1
        %s659 = sand.u32 %s146, 1
        %s660 = smul.addr %s659, 16
        %s661 = scalar_lea.vmem [#allocation8], %s660
        // Predicated region
        $region155: #{attention_forward.4} parent=133 // pred_check
          %p662 = pneg %p156
        $region156: #{attention_forward.4} parent=133 // pred_check_branch
          %664 = sbr.rel (%p662) target = $region158
        $region157: #{attention_forward.4} parent=133 // pred_region
          %s665 = sadd.s32 %s20, %s22
          %s666 = smul.u32 2, %s665
          %s667 = smul.addr %s666, 2
          %s668 = sadd.s32 %s21, %s667
          %s669 = smul.addr %s668, 8
          %s670 = scalar_lea.vmem %s3, %s669
          // Predicated region
          $region159: #{attention_forward.4} parent=157 // pred_check
            _
          $region160: #{attention_forward.4} parent=157 // pred_check_branch
            %672 = sbr.rel (0) target = $region162
          $region161: #{attention_forward.4} parent=157 // pred_region
            // Predicated region
            $region163: #{attention_forward.4} parent=161 // pred_check
              _
            $region164: #{attention_forward.4} parent=161 // pred_check_branch
              %674 = sbr.rel (0) target = $region166
            $region165: #{attention_forward.4} parent=161 // pred_region
              // Predicated region
              $region178: #{attention_forward.4} parent=165 // pred_check
                _
              $region179: #{attention_forward.4} parent=165 // pred_check_branch
                %692 = sbr.rel (0) target = $region181
              $region180: #{attention_forward.4} parent=165 // pred_region
                loop: start=0, step=1, limit=1
                $region182: #{attention_forward.4} parent=180 // loop_pre_header
                  _
                $region183: #{attention_forward.4} parent=180 // loop_header
                  %s694 = sphi 0, %s698
                  %p695 = scmp.ge.s32.totalorder %s694, 1
                  %s699 = sphi %s661, %s661
                  %s700 = sphi %s670, %s670
                $region184: #{attention_forward.4} parent=180 // loop_header_branch
                  %697 = sbr.rel (%p695) target = $region188
                $region185: #{attention_forward.4} parent=180 // loop_body
                  %v701 = vld [vmem:[%s699] sm:$0xff]
                  %702 = vst [vmem:[%s700] sm:$0xff] %v701
                  %v703 = vld [vmem:[%s699 + $0x8] sm:$0xff]
                  %704 = vst [vmem:[%s700 + $0x10] sm:$0xff] %v703
                $region186: #{attention_forward.4} parent=180 // loop_footer
                  %s698 = sadd.s32 1, %s694
                $region187: #{attention_forward.4} parent=180 // loop_footer_branch
                  %693 = sbr.rel target = $region183
                $region188: #{attention_forward.4} parent=180 // loop_exit
                  _
              $region181: #{attention_forward.4} parent=165 // pred_fallthru
                _
              // Predicated region
              $region189: #{attention_forward.4} parent=165 // pred_check
                _
              $region190: #{attention_forward.4} parent=165 // pred_check_branch
                %706 = sbr.rel target = $region192
              $region191: #{attention_forward.4} parent=165 // pred_region
                _
              $region192: #{attention_forward.4} parent=165 // pred_fallthru
                _
            $region166: #{attention_forward.4} parent=161 // pred_fallthru
              _
            // Predicated region
            $region167: #{attention_forward.4} parent=161 // pred_check
              _
            $region168: #{attention_forward.4} parent=161 // pred_check_branch
              %676 = sbr.rel target = $region170
            $region169: #{attention_forward.4} parent=161 // pred_region
              %s678 = ssub.s32 256, 1
              loop: start=0, step=1, limit=1
              $region171: #{attention_forward.4} parent=169 // loop_pre_header
                _
              $region172: #{attention_forward.4} parent=169 // loop_header
                %s680 = sphi 0, %s684
                %p681 = scmp.ge.s32.totalorder %s680, 1
                %s685 = sphi %s661, %s661
                %s686 = sphi %s670, %s670
              $region173: #{attention_forward.4} parent=169 // loop_header_branch
                %683 = sbr.rel (%p681) target = $region177
              $region174: #{attention_forward.4} parent=169 // loop_body
                %v687 = vld [vmem:[%s685] sm:%s678]
                %688 = vst [vmem:[%s686] sm:%s678] %v687
                %v689 = vld [vmem:[%s685 + $0x8] sm:%s678]
                %690 = vst [vmem:[%s686 + $0x10] sm:%s678] %v689
              $region175: #{attention_forward.4} parent=169 // loop_footer
                %s684 = sadd.s32 1, %s680
              $region176: #{attention_forward.4} parent=169 // loop_footer_branch
                %679 = sbr.rel target = $region172
              $region177: #{attention_forward.4} parent=169 // loop_exit
                _
            $region170: #{attention_forward.4} parent=161 // pred_fallthru
              _
          $region162: #{attention_forward.4} parent=157 // pred_fallthru
            _
          %707 = vnop
        $region158: #{attention_forward.4} parent=133 // pred_fallthru
          _
      $region134: #{attention_forward.4} parent=5 // pred_fallthru
        _
      %p708 = scmp.le.s32.totalorder 2, %s9
      // Predicated region
      $region193: #{attention_forward.4} parent=5 // pred_check
        %p709 = pneg %p708
      $region194: #{attention_forward.4} parent=5 // pred_check_branch
        %711 = sbr.rel (%p709) target = $region196
      $region195: #{attention_forward.4} parent=5 // pred_region
        %s712 = ssub.s32 %s9, 2
        // Predicated region
        $region197: #{attention_forward.4} parent=195 // pred_check
          %p713 = pneg %p162
        $region198: #{attention_forward.4} parent=195 // pred_check_branch
          %715 = sbr.rel (%p713) target = $region200
        $region199: #{attention_forward.4} parent=195 // pred_region
          %s716 = sand.u32 %s147, 1
          %s717 = sand.u32 %s147, 1
          %s718 = smul.addr %s717, 16
          %s719 = scalar_lea.vmem [#allocation8], %s718
        $region200: #{attention_forward.4} parent=195 // pred_fallthru
          _
      $region196: #{attention_forward.4} parent=5 // pred_fallthru
        _
    $region6: #{attention_forward.4} parent=1 // loop_footer
      %s13 = sadd.s32 1, %s9
    $region7: #{attention_forward.4} parent=1 // loop_footer_branch
      %8 = sbr.rel target = $region3
    $region8: #{attention_forward.4} parent=1 // loop_exit
      _

</llo_original>
